<compile_context>
chip_gen: v7x
topology: tpu7x:2x2x1
jax: 0.10.0
libtpu: 0.0.40
codegen_flags: <defaults>
</compile_context>

<pallas_src>
import jax
import jax.numpy as jnp
from jax.experimental import pallas as pl
from jax.experimental.pallas import tpu as pltpu

BN_EPS = 1e-5
CHANNELS = (3, 32, 64, 128)

# Row offsets of each weight block inside the packed weight matrix
# (8-aligned so in-kernel sublane slices are cheap).
_W_ROWS = (0, 32, 320, 896)            # conv0 (27 rows), conv1 (288), conv2 (576), fc (128)
_W_TOTAL_ROWS = 1024

_VMEM = pl.BlockSpec(memory_space=pltpu.MemorySpace.VMEM)


# ---------------------------------------------------------------------------
# In-kernel helpers
# ---------------------------------------------------------------------------
def _bn_relu(y, vec_ref, row, cout):
    """Training-mode BatchNorm (batch stats, biased variance) + ReLU.

    The conv bias is intentionally absent from the conv matmuls: subtracting
    the batch mean cancels it exactly (only valid for train-mode BN).
    """
    gamma = vec_ref[row:row + 1, 0:cout]                  # [1, cout]
    beta = vec_ref[row + 1:row + 2, 0:cout]               # [1, cout]
    mean = jnp.mean(y, axis=0, keepdims=True)
    centered = y - mean
    var = jnp.mean(centered * centered, axis=0, keepdims=True)
    y = centered * jax.lax.rsqrt(var + BN_EPS) * gamma + beta
    return jnp.maximum(y, 0.0)


def _scatter_padded(y, pad_even, pad_odd):
    """Store activation y (rows ordered (n, i, j)) into the next layer's
    zero-padded buffers with the H axis pre-split by padded-row parity:

        pad_even[b, q, w, c] = padded row 2*q    (includes top/bottom zero rows)
        pad_odd [b, q, w, c] = padded row 2*q+1  (all interior rows)

    Two slab stores replace the old per-(batch,row) scatter loop, and they
    make every later conv H-tap a plain (non-strided) slice.
    """
    n, qp1, wp, c = pad_even.shape
    q, s = qp1 - 1, wp - 2
    pad_even[...] = jnp.zeros(pad_even.shape, pad_even.dtype)
    pad_odd[...] = jnp.zeros(pad_odd.shape, pad_odd.dtype)
    y5 = y.reshape(n, q, 2, s, c)                         # input row i = 2*q' + r
    # even input rows i=2q'   -> padded row i+1 = 2q'+1 -> pad_odd rows 0..q-1
    pad_odd[:, pl.ds(0, q), pl.ds(1, s), :] = y5[:, :, 0:1, :, :].reshape(n, q, s, c)
    # odd  input rows i=2q'+1 -> padded row i+1 = 2q'+2 -> pad_even rows 1..q
    pad_even[:, pl.ds(1, q), pl.ds(1, s), :] = y5[:, :, 1:2, :, :].reshape(n, q, s, c)


def _conv_bn_relu(pad_even, pad_odd, col_ref, w_ref, w_row0, vec_ref, vec_row, cout):
    """Conv(3x3, stride 2, pad 1) + BN + ReLU as ONE deep-K MXU matmul.

    The [m, 9*cin] im2col block is built in the shared VMEM scratch `col_ref`
    with 9 slab stores (H taps = plain slices of the parity-split buffers,
    W taps = hardware sublane-strided loads), then multiplied against the
    flattened [9*cin, cout] weight block in a single matmul.
    """
    n, qp1, wp, cin = pad_even.shape
    ho = qp1 - 1                                          # output spatial (square maps)
    m = n * ho * ho
    k = 0
    for buf, q0 in ((pad_even, 0), (pad_odd, 0), (pad_even, 1)):    # kh = 0, 1, 2
        for kw in range(3):
            tap = buf[:, pl.ds(q0, ho), pl.ds(kw, ho, stride=2), :]  # [n, ho, wo, cin]
            col_ref[0:m, pl.ds(k, cin)] = tap.reshape(m, cin)
            k += cin
    y = jnp.dot(col_ref[0:m, 0:k], w_ref[w_row0:w_row0 + k, 0:cout],
                preferred_element_type=jnp.float32)                   # [m, cout]
    return _bn_relu(y, vec_ref, vec_row, cout)


# ---------------------------------------------------------------------------
# Fully fused forward kernel
# ---------------------------------------------------------------------------
def _encoder_kernel(patch_ref, w_ref, vec_ref, out_ref,
                    pad_e1, pad_o1, pad_e2, pad_o2, col_ref):
    n = pad_e1.shape[0]
    e = out_ref.shape[1]
    c1, c2, c3 = CHANNELS[1], CHANNELS[2], CHANNELS[3]

    # ---- layer 0: im2col was built in the XLA wrapper (lane-dense [m0, 27]) --
    k0 = patch_ref.shape[1]
    y = jnp.dot(patch_ref[...], w_ref[_W_ROWS[0]:_W_ROWS[0] + k0, 0:c1],
                preferred_element_type=jnp.float32)
    y = _bn_relu(y, vec_ref, 0, c1)
    _scatter_padded(y, pad_e1, pad_o1)

    # ---- layer 1 ----
    y = _conv_bn_relu(pad_e1, pad_o1, col_ref, w_ref, _W_ROWS[1], vec_ref, 2, c2)
    _scatter_padded(y, pad_e2, pad_o2)

    # ---- layer 2 ----
    y = _conv_bn_relu(pad_e2, pad_o2, col_ref, w_ref, _W_ROWS[2], vec_ref, 4, c3)

    # ---- AdaptiveAvgPool2d((1,1)) + Linear, fused ----
    s3 = (pad_e2.shape[2] - 2) // 2
    hw = s3 * s3
    pooled = jnp.mean(y.reshape(n, hw, c3), axis=1)                   # [n, 128]
    out_ref[...] = (jnp.dot(pooled, w_ref[_W_ROWS[3]:_W_ROWS[3] + c3, 0:e],
                            preferred_element_type=jnp.float32)
                    + vec_ref[6:7, 0:e])


# ---------------------------------------------------------------------------
# Wrapper
# ---------------------------------------------------------------------------
def _pack_weights(params, embed_dim):
    """Pack all parameters into two arrays -> 2 weight DMAs instead of 11."""
    cols = max(128, embed_dim)
    w = jnp.zeros((_W_TOTAL_ROWS, cols), jnp.float32)
    w = w.at[_W_ROWS[0]:_W_ROWS[0] + 9 * CHANNELS[0], 0:CHANNELS[1]].set(params["conv0_w"])
    w = w.at[_W_ROWS[1]:_W_ROWS[1] + 9 * CHANNELS[1], 0:CHANNELS[2]].set(params["conv1_w"])
    w = w.at[_W_ROWS[2]:_W_ROWS[2] + 9 * CHANNELS[2], 0:CHANNELS[3]].set(params["conv2_w"])
    w = w.at[_W_ROWS[3]:_W_ROWS[3] + CHANNELS[3], 0:embed_dim].set(params["fc_w"])

    v = jnp.zeros((8, cols), jnp.float32)
    for i in range(3):
        c = CHANNELS[i + 1]
        v = v.at[2 * i, 0:c].set(params[f"bn{i}_g"])
        v = v.at[2 * i + 1, 0:c].set(params[f"bn{i}_b"])
    v = v.at[6, 0:embed_dim].set(params["fc_b"])
    return w, v


@jax.jit
def image_encoder_forward(x_nchw, params):
    """Full forward pass. x_nchw: [N, 3, H, W] float32 (PyTorch layout)."""
    x = jnp.transpose(x_nchw, (0, 2, 3, 1)).astype(jnp.float32)       # -> NHWC
    n, h, w_in, cin = x.shape
    assert h == w_in and h % 8 == 0, "square input with H divisible by 8 expected"
    e = params["fc_w"].shape[1]
    s1, s2, s3 = h // 2, h // 4, h // 8                                # 8, 4, 2

    # Layer-0 im2col in the XLA wrapper (fixes the lane-sparse C=3 layout):
    # one [n*s1*s1, 27] matrix, column order (kh, kw, cin).
    xp = jnp.pad(x, ((0, 0), (1, 1), (1, 1), (0, 0)))
    taps = [xp[:, kh:kh + 2 * s1:2, kw:kw + 2 * s1:2, :]
            for kh in range(3) for kw in range(3)]
    patches = jnp.concatenate(taps, axis=-1).reshape(n * s1 * s1, 9 * cin)

    w_packed, vec_packed = _pack_weights(params, e)

    flops = 2 * (patches.shape[0] * 9 * cin * CHANNELS[1]
                 + n * s2 * s2 * 9 * CHANNELS[1] * CHANNELS[2]
                 + n * s3 * s3 * 9 * CHANNELS[2] * CHANNELS[3]
                 + n * CHANNELS[3] * e)
    bytes_accessed = 4 * int(patches.size + w_packed.size + vec_packed.size + n * e)
    cost = pl.CostEstimate(flops=int(flops),
                           transcendentals=int(sum(CHANNELS[1:])),
                           bytes_accessed=bytes_accessed)

    scratch_shapes = [
        pltpu.VMEM((n, s1 // 2 + 1, s1 + 2, CHANNELS[1]), jnp.float32),  # pad_e1
        pltpu.VMEM((n, s1 // 2,     s1 + 2, CHANNELS[1]), jnp.float32),  # pad_o1
        pltpu.VMEM((n, s2 // 2 + 1, s2 + 2, CHANNELS[2]), jnp.float32),  # pad_e2
        pltpu.VMEM((n, s2 // 2,     s2 + 2, CHANNELS[2]), jnp.float32),  # pad_o2
        pltpu.VMEM((n * s2 * s2, 9 * CHANNELS[2]), jnp.float32),         # shared im2col
    ]

    return pl.pallas_call(
        _encoder_kernel,
        out_shape=jax.ShapeDtypeStruct((n, e), jnp.float32),
        in_specs=[_VMEM, _VMEM, _VMEM],
        out_specs=_VMEM,
        scratch_shapes=scratch_shapes,
        compiler_params=pltpu.CompilerParams(vmem_limit_bytes=32 * 1024 * 1024),
        cost_estimate=cost,
    )(patches, w_packed, vec_packed)


# ---------------------------------------------------------------------------
# Pure-JAX reference (same math, includes the conv bias) for a silent check
# ---------------------------------------------------------------------------
def reference_forward(x_nchw, params):
    x = jnp.transpose(x_nchw, (0, 2, 3, 1))
    for i in range(3):
        wmat = params[f"conv{i}_w"].reshape(3, 3, CHANNELS[i], CHANNELS[i + 1])
        y = jax.lax.conv_general_dilated(
            x, wmat, window_strides=(2, 2), padding=((1, 1), (1, 1)),
            dimension_numbers=("NHWC", "HWIO", "NHWC"),
        ) + params[f"conv{i}_b"]
        mean = jnp.mean(y, axis=(0, 1, 2))
        var = jnp.mean((y - mean) ** 2, axis=(0, 1, 2))
        y = (y - mean) * jax.lax.rsqrt(var + BN_EPS)
        y = y * params[f"bn{i}_g"] + params[f"bn{i}_b"]
        x = jnp.maximum(y, 0.0)
    pooled = jnp.mean(x, axis=(1, 2))                  # [N, 128]
    return pooled @ params["fc_w"] + params["fc_b"]


# ---------------------------------------------------------------------------
# Deterministic parameter init (synthetic; mirrors nn.Module shapes)
# ---------------------------------------------------------------------------
def init_params(key, embed_dim):
    params = {}
    keys = jax.random.split(key, 8)
    for i in range(3):
        cin, cout = CHANNELS[i], CHANNELS[i + 1]
        fan_in = 9 * cin
        # conv weight stored directly in matmul layout [kh*kw*cin, cout]
        params[f"conv{i}_w"] = (
            jax.random.normal(keys[2 * i], (fan_in, cout), jnp.float32)
            / jnp.sqrt(fan_in))
        # bias kept only for the reference: it cancels under train-mode BN
        params[f"conv{i}_b"] = (
            0.01 * jax.random.normal(keys[2 * i + 1], (cout,), jnp.float32))
        params[f"bn{i}_g"] = jnp.ones((cout,), jnp.float32)
        params[f"bn{i}_b"] = jnp.zeros((cout,), jnp.float32)
    params["fc_w"] = (
        jax.random.normal(keys[6], (128, embed_dim), jnp.float32) / jnp.sqrt(128.0))
    params["fc_b"] = 0.01 * jax.random.normal(keys[7], (embed_dim,), jnp.float32)
    return params


if __name__ == "__main__":
    key = jax.random.PRNGKey(0)
    k_x, k_p = jax.random.split(key)

    embed_dim = 32
    x = jax.random.normal(k_x, (2, 3, 16, 16), jnp.float32)   # NCHW like PyTorch
    params = init_params(k_p, embed_dim)

    out = jax.block_until_ready(image_encoder_forward(x, params))
    assert out.shape == (2, embed_dim), out.shape

    ref = jax.block_until_ready(reference_forward(x, params))
    err = float(jnp.max(jnp.abs(out - ref)))
    assert jnp.allclose(out, ref, atol=2e-3, rtol=2e-3), err

    print("KERNEL_OK")
</pallas_src>

<mosaic_0001>
module attributes {stable_mosaic.version = 11 : i64} {
  func.func @_encoder_kernel(%arg0: memref<128x27xf32, #tpu.memory_space<vmem>>, %arg1: memref<1024x128xf32, #tpu.memory_space<vmem>>, %arg2: memref<8x128xf32, #tpu.memory_space<vmem>>, %arg3: memref<2x32xf32, #tpu.memory_space<vmem>>, %arg4: memref<2x5x10x32xf32, #tpu.memory_space<vmem>>, %arg5: memref<2x4x10x32xf32, #tpu.memory_space<vmem>>, %arg6: memref<2x3x6x64xf32, #tpu.memory_space<vmem>>, %arg7: memref<2x2x6x64xf32, #tpu.memory_space<vmem>>, %arg8: memref<32x576xf32, #tpu.memory_space<vmem>>) attributes {dimension_semantics = [], scalar_prefetch = 0 : i64, scratch_operands = 5 : i64, tpu.core_type = #tpu.core_type<tc>} {
    %c0 = arith.constant 0 : index
    %c0_0 = arith.constant 0 : index
    %0 = vector.load %arg0[%c0, %c0_0] : memref<128x27xf32, #tpu.memory_space<vmem>>, vector<128x27xf32>
    %c0_1 = arith.constant 0 : index
    %c0_2 = arith.constant 0 : index
    %1 = vector.load %arg1[%c0_1, %c0_2] : memref<1024x128xf32, #tpu.memory_space<vmem>>, vector<27x32xf32>
    %cst = arith.constant dense<0.000000e+00> : vector<128x32xf32>
    %2 = tpu.matmul %0, %1, %cst {dimension_numbers = #tpu.dot_dimension_numbers<[1], [0], [0], [1], [0, 0, 1, 1], [], []>} : vector<128x27xf32>, vector<27x32xf32>, vector<128x32xf32> -> vector<128x32xf32>
    %c0_3 = arith.constant 0 : index
    %c0_4 = arith.constant 0 : index
    %3 = vector.load %arg2[%c0_3, %c0_4] : memref<8x128xf32, #tpu.memory_space<vmem>>, vector<1x32xf32>
    %c1 = arith.constant 1 : index
    %c0_5 = arith.constant 0 : index
    %4 = vector.load %arg2[%c1, %c0_5] : memref<8x128xf32, #tpu.memory_space<vmem>>, vector<1x32xf32>
    %cst_6 = arith.constant dense<0.000000e+00> : vector<32xf32>
    %5 = vector.multi_reduction <add>, %2, %cst_6 [0] : vector<128x32xf32> to vector<32xf32>
    %6 = vector.shape_cast %5 : vector<32xf32> to vector<1x32xf32>
    %cst_7 = arith.constant 1.280000e+02 : f32
    %7 = vector.broadcast %cst_7 : f32 to vector<1x32xf32>
    %8 = arith.divf %6, %7 : vector<1x32xf32>
    %9 = vector.broadcast %8 : vector<1x32xf32> to vector<128x32xf32>
    %10 = arith.subf %2, %9 : vector<128x32xf32>
    %11 = arith.mulf %10, %10 : vector<128x32xf32>
    %cst_8 = arith.constant dense<0.000000e+00> : vector<32xf32>
    %12 = vector.multi_reduction <add>, %11, %cst_8 [0] : vector<128x32xf32> to vector<32xf32>
    %13 = vector.shape_cast %12 : vector<32xf32> to vector<1x32xf32>
    %cst_9 = arith.constant 1.280000e+02 : f32
    %14 = vector.broadcast %cst_9 : f32 to vector<1x32xf32>
    %15 = arith.divf %13, %14 : vector<1x32xf32>
    %cst_10 = arith.constant 9.99999974E-6 : f32
    %16 = vector.broadcast %cst_10 : f32 to vector<1x32xf32>
    %17 = arith.addf %15, %16 : vector<1x32xf32>
    %18 = math.rsqrt %17 : vector<1x32xf32>
    %19 = vector.broadcast %18 : vector<1x32xf32> to vector<128x32xf32>
    %20 = arith.mulf %10, %19 : vector<128x32xf32>
    %21 = vector.broadcast %3 : vector<1x32xf32> to vector<128x32xf32>
    %22 = arith.mulf %20, %21 : vector<128x32xf32>
    %23 = vector.broadcast %4 : vector<1x32xf32> to vector<128x32xf32>
    %24 = arith.addf %22, %23 : vector<128x32xf32>
    %cst_11 = arith.constant 0.000000e+00 : f32
    %25 = vector.broadcast %cst_11 : f32 to vector<128x32xf32>
    %26 = arith.maximumf %24, %25 : vector<128x32xf32>
    %cst_12 = arith.constant 0.000000e+00 : f32
    %27 = vector.broadcast %cst_12 : f32 to vector<2x5x10x32xf32>
    %c0_13 = arith.constant 0 : index
    %c0_14 = arith.constant 0 : index
    %c0_15 = arith.constant 0 : index
    %c0_16 = arith.constant 0 : index
    %28 = vector.load %arg4[%c0_13, %c0_14, %c0_15, %c0_16] : memref<2x5x10x32xf32, #tpu.memory_space<vmem>>, vector<2x5x10x32xf32>
    tpu.vector_store %arg4[%c0_13, %c0_14, %c0_15, %c0_16], %27 {strides = array<i32>} : memref<2x5x10x32xf32, #tpu.memory_space<vmem>>, vector<2x5x10x32xf32>,
    %cst_17 = arith.constant 0.000000e+00 : f32
    %29 = vector.broadcast %cst_17 : f32 to vector<2x4x10x32xf32>
    %c0_18 = arith.constant 0 : index
    %c0_19 = arith.constant 0 : index
    %c0_20 = arith.constant 0 : index
    %c0_21 = arith.constant 0 : index
    %30 = vector.load %arg5[%c0_18, %c0_19, %c0_20, %c0_21] : memref<2x4x10x32xf32, #tpu.memory_space<vmem>>, vector<2x4x10x32xf32>
    tpu.vector_store %arg5[%c0_18, %c0_19, %c0_20, %c0_21], %29 {strides = array<i32>} : memref<2x4x10x32xf32, #tpu.memory_space<vmem>>, vector<2x4x10x32xf32>,
    %31 = vector.shape_cast %26 : vector<128x32xf32> to vector<2x4x2x8x32xf32>
    %32 = vector.extract_strided_slice %31 {offsets = [0, 0, 0, 0, 0], sizes = [2, 4, 1, 8, 32], strides = [1, 1, 1, 1, 1]} : vector<2x4x2x8x32xf32> to vector<2x4x1x8x32xf32>
    %33 = vector.shape_cast %32 : vector<2x4x1x8x32xf32> to vector<2x4x8x32xf32>
    %c0_22 = arith.constant 0 : index
    %c0_23 = arith.constant 0 : index
    %c1_24 = arith.constant 1 : index
    %c0_25 = arith.constant 0 : index
    %34 = vector.load %arg5[%c0_22, %c0_23, %c1_24, %c0_25] : memref<2x4x10x32xf32, #tpu.memory_space<vmem>>, vector<2x4x8x32xf32>
    tpu.vector_store %arg5[%c0_22, %c0_23, %c1_24, %c0_25], %33 {strides = array<i32>} : memref<2x4x10x32xf32, #tpu.memory_space<vmem>>, vector<2x4x8x32xf32>,
    %35 = vector.extract_strided_slice %31 {offsets = [0, 0, 1, 0, 0], sizes = [2, 4, 1, 8, 32], strides = [1, 1, 1, 1, 1]} : vector<2x4x2x8x32xf32> to vector<2x4x1x8x32xf32>
    %36 = vector.shape_cast %35 : vector<2x4x1x8x32xf32> to vector<2x4x8x32xf32>
    %c0_26 = arith.constant 0 : index
    %c1_27 = arith.constant 1 : index
    %c1_28 = arith.constant 1 : index
    %c0_29 = arith.constant 0 : index
    %37 = vector.load %arg4[%c0_26, %c1_27, %c1_28, %c0_29] : memref<2x5x10x32xf32, #tpu.memory_space<vmem>>, vector<2x4x8x32xf32>
    tpu.vector_store %arg4[%c0_26, %c1_27, %c1_28, %c0_29], %36 {strides = array<i32>} : memref<2x5x10x32xf32, #tpu.memory_space<vmem>>, vector<2x4x8x32xf32>,
    %c0_30 = arith.constant 0 : index
    %c0_31 = arith.constant 0 : index
    %c0_32 = arith.constant 0 : index
    %c0_33 = arith.constant 0 : index
    %38 = tpu.strided_load %arg4[%c0_30, %c0_31, %c0_32, %c0_33] {strides = array<i32: 1, 1, 2, 1>} : memref<2x5x10x32xf32, #tpu.memory_space<vmem>>, vector<2x4x4x32xf32>
    %39 = vector.shape_cast %38 : vector<2x4x4x32xf32> to vector<32x32xf32>
    %c0_34 = arith.constant 0 : index
    %c0_35 = arith.constant 0 : index
    %40 = vector.load %arg8[%c0_34, %c0_35] : memref<32x576xf32, #tpu.memory_space<vmem>>, vector<32x32xf32>
    tpu.vector_store %arg8[%c0_34, %c0_35], %39 {strides = array<i32>} : memref<32x576xf32, #tpu.memory_space<vmem>>, vector<32x32xf32>,
    %c0_36 = arith.constant 0 : index
    %c0_37 = arith.constant 0 : index
    %c1_38 = arith.constant 1 : index
    %c0_39 = arith.constant 0 : index
    %41 = tpu.strided_load %arg4[%c0_36, %c0_37, %c1_38, %c0_39] {strides = array<i32: 1, 1, 2, 1>} : memref<2x5x10x32xf32, #tpu.memory_space<vmem>>, vector<2x4x4x32xf32>
    %42 = vector.shape_cast %41 : vector<2x4x4x32xf32> to vector<32x32xf32>
    %c0_40 = arith.constant 0 : index
    %c32 = arith.constant 32 : index
    %43 = vector.load %arg8[%c0_40, %c32] : memref<32x576xf32, #tpu.memory_space<vmem>>, vector<32x32xf32>
    tpu.vector_store %arg8[%c0_40, %c32], %42 {strides = array<i32>} : memref<32x576xf32, #tpu.memory_space<vmem>>, vector<32x32xf32>,
    %c0_41 = arith.constant 0 : index
    %c0_42 = arith.constant 0 : index
    %c2 = arith.constant 2 : index
    %c0_43 = arith.constant 0 : index
    %44 = tpu.strided_load %arg4[%c0_41, %c0_42, %c2, %c0_43] {strides = array<i32: 1, 1, 2, 1>} : memref<2x5x10x32xf32, #tpu.memory_space<vmem>>, vector<2x4x4x32xf32>
    %45 = vector.shape_cast %44 : vector<2x4x4x32xf32> to vector<32x32xf32>
    %c0_44 = arith.constant 0 : index
    %c64 = arith.constant 64 : index
    %46 = vector.load %arg8[%c0_44, %c64] : memref<32x576xf32, #tpu.memory_space<vmem>>, vector<32x32xf32>
    tpu.vector_store %arg8[%c0_44, %c64], %45 {strides = array<i32>} : memref<32x576xf32, #tpu.memory_space<vmem>>, vector<32x32xf32>,
    %c0_45 = arith.constant 0 : index
    %c0_46 = arith.constant 0 : index
    %c0_47 = arith.constant 0 : index
    %c0_48 = arith.constant 0 : index
    %47 = tpu.strided_load %arg5[%c0_45, %c0_46, %c0_47, %c0_48] {strides = array<i32: 1, 1, 2, 1>} : memref<2x4x10x32xf32, #tpu.memory_space<vmem>>, vector<2x4x4x32xf32>
    %48 = vector.shape_cast %47 : vector<2x4x4x32xf32> to vector<32x32xf32>
    %c0_49 = arith.constant 0 : index
    %c96 = arith.constant 96 : index
    %49 = vector.load %arg8[%c0_49, %c96] : memref<32x576xf32, #tpu.memory_space<vmem>>, vector<32x32xf32>
    tpu.vector_store %arg8[%c0_49, %c96], %48 {strides = array<i32>} : memref<32x576xf32, #tpu.memory_space<vmem>>, vector<32x32xf32>,
    %c0_50 = arith.constant 0 : index
    %c0_51 = arith.constant 0 : index
    %c1_52 = arith.constant 1 : index
    %c0_53 = arith.constant 0 : index
    %50 = tpu.strided_load %arg5[%c0_50, %c0_51, %c1_52, %c0_53] {strides = array<i32: 1, 1, 2, 1>} : memref<2x4x10x32xf32, #tpu.memory_space<vmem>>, vector<2x4x4x32xf32>
    %51 = vector.shape_cast %50 : vector<2x4x4x32xf32> to vector<32x32xf32>
    %c0_54 = arith.constant 0 : index
    %c128 = arith.constant 128 : index
    %52 = vector.load %arg8[%c0_54, %c128] : memref<32x576xf32, #tpu.memory_space<vmem>>, vector<32x32xf32>
    tpu.vector_store %arg8[%c0_54, %c128], %51 {strides = array<i32>} : memref<32x576xf32, #tpu.memory_space<vmem>>, vector<32x32xf32>,
    %c0_55 = arith.constant 0 : index
    %c0_56 = arith.constant 0 : index
    %c2_57 = arith.constant 2 : index
    %c0_58 = arith.constant 0 : index
    %53 = tpu.strided_load %arg5[%c0_55, %c0_56, %c2_57, %c0_58] {strides = array<i32: 1, 1, 2, 1>} : memref<2x4x10x32xf32, #tpu.memory_space<vmem>>, vector<2x4x4x32xf32>
    %54 = vector.shape_cast %53 : vector<2x4x4x32xf32> to vector<32x32xf32>
    %c0_59 = arith.constant 0 : index
    %c160 = arith.constant 160 : index
    %55 = vector.load %arg8[%c0_59, %c160] : memref<32x576xf32, #tpu.memory_space<vmem>>, vector<32x32xf32>
    tpu.vector_store %arg8[%c0_59, %c160], %54 {strides = array<i32>} : memref<32x576xf32, #tpu.memory_space<vmem>>, vector<32x32xf32>,
    %c0_60 = arith.constant 0 : index
    %c1_61 = arith.constant 1 : index
    %c0_62 = arith.constant 0 : index
    %c0_63 = arith.constant 0 : index
    %56 = tpu.strided_load %arg4[%c0_60, %c1_61, %c0_62, %c0_63] {strides = array<i32: 1, 1, 2, 1>} : memref<2x5x10x32xf32, #tpu.memory_space<vmem>>, vector<2x4x4x32xf32>
    %57 = vector.shape_cast %56 : vector<2x4x4x32xf32> to vector<32x32xf32>
    %c0_64 = arith.constant 0 : index
    %c192 = arith.constant 192 : index
    %58 = vector.load %arg8[%c0_64, %c192] : memref<32x576xf32, #tpu.memory_space<vmem>>, vector<32x32xf32>
    tpu.vector_store %arg8[%c0_64, %c192], %57 {strides = array<i32>} : memref<32x576xf32, #tpu.memory_space<vmem>>, vector<32x32xf32>,
    %c0_65 = arith.constant 0 : index
    %c1_66 = arith.constant 1 : index
    %c1_67 = arith.constant 1 : index
    %c0_68 = arith.constant 0 : index
    %59 = tpu.strided_load %arg4[%c0_65, %c1_66, %c1_67, %c0_68] {strides = array<i32: 1, 1, 2, 1>} : memref<2x5x10x32xf32, #tpu.memory_space<vmem>>, vector<2x4x4x32xf32>
    %60 = vector.shape_cast %59 : vector<2x4x4x32xf32> to vector<32x32xf32>
    %c0_69 = arith.constant 0 : index
    %c224 = arith.constant 224 : index
    %61 = vector.load %arg8[%c0_69, %c224] : memref<32x576xf32, #tpu.memory_space<vmem>>, vector<32x32xf32>
    tpu.vector_store %arg8[%c0_69, %c224], %60 {strides = array<i32>} : memref<32x576xf32, #tpu.memory_space<vmem>>, vector<32x32xf32>,
    %c0_70 = arith.constant 0 : index
    %c1_71 = arith.constant 1 : index
    %c2_72 = arith.constant 2 : index
    %c0_73 = arith.constant 0 : index
    %62 = tpu.strided_load %arg4[%c0_70, %c1_71, %c2_72, %c0_73] {strides = array<i32: 1, 1, 2, 1>} : memref<2x5x10x32xf32, #tpu.memory_space<vmem>>, vector<2x4x4x32xf32>
    %63 = vector.shape_cast %62 : vector<2x4x4x32xf32> to vector<32x32xf32>
    %c0_74 = arith.constant 0 : index
    %c256 = arith.constant 256 : index
    %64 = vector.load %arg8[%c0_74, %c256] : memref<32x576xf32, #tpu.memory_space<vmem>>, vector<32x32xf32>
    tpu.vector_store %arg8[%c0_74, %c256], %63 {strides = array<i32>} : memref<32x576xf32, #tpu.memory_space<vmem>>, vector<32x32xf32>,
    %c0_75 = arith.constant 0 : index
    %c0_76 = arith.constant 0 : index
    %65 = vector.load %arg8[%c0_75, %c0_76] : memref<32x576xf32, #tpu.memory_space<vmem>>, vector<32x288xf32>
    %c32_77 = arith.constant 32 : index
    %c0_78 = arith.constant 0 : index
    %66 = vector.load %arg1[%c32_77, %c0_78] : memref<1024x128xf32, #tpu.memory_space<vmem>>, vector<288x64xf32>
    %cst_79 = arith.constant dense<0.000000e+00> : vector<32x64xf32>
    %67 = tpu.matmul %65, %66, %cst_79 {dimension_numbers = #tpu.dot_dimension_numbers<[1], [0], [0], [1], [0, 0, 1, 1], [], []>} : vector<32x288xf32>, vector<288x64xf32>, vector<32x64xf32> -> vector<32x64xf32>
    %c2_80 = arith.constant 2 : index
    %c0_81 = arith.constant 0 : index
    %68 = vector.load %arg2[%c2_80, %c0_81] : memref<8x128xf32, #tpu.memory_space<vmem>>, vector<1x64xf32>
    %c3 = arith.constant 3 : index
    %c0_82 = arith.constant 0 : index
    %69 = vector.load %arg2[%c3, %c0_82] : memref<8x128xf32, #tpu.memory_space<vmem>>, vector<1x64xf32>
    %cst_83 = arith.constant dense<0.000000e+00> : vector<64xf32>
    %70 = vector.multi_reduction <add>, %67, %cst_83 [0] : vector<32x64xf32> to vector<64xf32>
    %71 = vector.shape_cast %70 : vector<64xf32> to vector<1x64xf32>
    %cst_84 = arith.constant 3.200000e+01 : f32
    %72 = vector.broadcast %cst_84 : f32 to vector<1x64xf32>
    %73 = arith.divf %71, %72 : vector<1x64xf32>
    %74 = vector.broadcast %73 : vector<1x64xf32> to vector<32x64xf32>
    %75 = arith.subf %67, %74 : vector<32x64xf32>
    %76 = arith.mulf %75, %75 : vector<32x64xf32>
    %cst_85 = arith.constant dense<0.000000e+00> : vector<64xf32>
    %77 = vector.multi_reduction <add>, %76, %cst_85 [0] : vector<32x64xf32> to vector<64xf32>
    %78 = vector.shape_cast %77 : vector<64xf32> to vector<1x64xf32>
    %cst_86 = arith.constant 3.200000e+01 : f32
    %79 = vector.broadcast %cst_86 : f32 to vector<1x64xf32>
    %80 = arith.divf %78, %79 : vector<1x64xf32>
    %cst_87 = arith.constant 9.99999974E-6 : f32
    %81 = vector.broadcast %cst_87 : f32 to vector<1x64xf32>
    %82 = arith.addf %80, %81 : vector<1x64xf32>
    %83 = math.rsqrt %82 : vector<1x64xf32>
    %84 = vector.broadcast %83 : vector<1x64xf32> to vector<32x64xf32>
    %85 = arith.mulf %75, %84 : vector<32x64xf32>
    %86 = vector.broadcast %68 : vector<1x64xf32> to vector<32x64xf32>
    %87 = arith.mulf %85, %86 : vector<32x64xf32>
    %88 = vector.broadcast %69 : vector<1x64xf32> to vector<32x64xf32>
    %89 = arith.addf %87, %88 : vector<32x64xf32>
    %cst_88 = arith.constant 0.000000e+00 : f32
    %90 = vector.broadcast %cst_88 : f32 to vector<32x64xf32>
    %91 = arith.maximumf %89, %90 : vector<32x64xf32>
    %cst_89 = arith.constant 0.000000e+00 : f32
    %92 = vector.broadcast %cst_89 : f32 to vector<2x3x6x64xf32>
    %c0_90 = arith.constant 0 : index
    %c0_91 = arith.constant 0 : index
    %c0_92 = arith.constant 0 : index
    %c0_93 = arith.constant 0 : index
    %93 = vector.load %arg6[%c0_90, %c0_91, %c0_92, %c0_93] : memref<2x3x6x64xf32, #tpu.memory_space<vmem>>, vector<2x3x6x64xf32>
    tpu.vector_store %arg6[%c0_90, %c0_91, %c0_92, %c0_93], %92 {strides = array<i32>} : memref<2x3x6x64xf32, #tpu.memory_space<vmem>>, vector<2x3x6x64xf32>,
    %cst_94 = arith.constant 0.000000e+00 : f32
    %94 = vector.broadcast %cst_94 : f32 to vector<2x2x6x64xf32>
    %c0_95 = arith.constant 0 : index
    %c0_96 = arith.constant 0 : index
    %c0_97 = arith.constant 0 : index
    %c0_98 = arith.constant 0 : index
    %95 = vector.load %arg7[%c0_95, %c0_96, %c0_97, %c0_98] : memref<2x2x6x64xf32, #tpu.memory_space<vmem>>, vector<2x2x6x64xf32>
    tpu.vector_store %arg7[%c0_95, %c0_96, %c0_97, %c0_98], %94 {strides = array<i32>} : memref<2x2x6x64xf32, #tpu.memory_space<vmem>>, vector<2x2x6x64xf32>,
    %96 = vector.shape_cast %91 : vector<32x64xf32> to vector<2x2x2x4x64xf32>
    %97 = vector.extract_strided_slice %96 {offsets = [0, 0, 0, 0, 0], sizes = [2, 2, 1, 4, 64], strides = [1, 1, 1, 1, 1]} : vector<2x2x2x4x64xf32> to vector<2x2x1x4x64xf32>
    %98 = vector.shape_cast %97 : vector<2x2x1x4x64xf32> to vector<2x2x4x64xf32>
    %c0_99 = arith.constant 0 : index
    %c0_100 = arith.constant 0 : index
    %c1_101 = arith.constant 1 : index
    %c0_102 = arith.constant 0 : index
    %99 = vector.load %arg7[%c0_99, %c0_100, %c1_101, %c0_102] : memref<2x2x6x64xf32, #tpu.memory_space<vmem>>, vector<2x2x4x64xf32>
    tpu.vector_store %arg7[%c0_99, %c0_100, %c1_101, %c0_102], %98 {strides = array<i32>} : memref<2x2x6x64xf32, #tpu.memory_space<vmem>>, vector<2x2x4x64xf32>,
    %100 = vector.extract_strided_slice %96 {offsets = [0, 0, 1, 0, 0], sizes = [2, 2, 1, 4, 64], strides = [1, 1, 1, 1, 1]} : vector<2x2x2x4x64xf32> to vector<2x2x1x4x64xf32>
    %101 = vector.shape_cast %100 : vector<2x2x1x4x64xf32> to vector<2x2x4x64xf32>
    %c0_103 = arith.constant 0 : index
    %c1_104 = arith.constant 1 : index
    %c1_105 = arith.constant 1 : index
    %c0_106 = arith.constant 0 : index
    %102 = vector.load %arg6[%c0_103, %c1_104, %c1_105, %c0_106] : memref<2x3x6x64xf32, #tpu.memory_space<vmem>>, vector<2x2x4x64xf32>
    tpu.vector_store %arg6[%c0_103, %c1_104, %c1_105, %c0_106], %101 {strides = array<i32>} : memref<2x3x6x64xf32, #tpu.memory_space<vmem>>, vector<2x2x4x64xf32>,
    %c0_107 = arith.constant 0 : index
    %c0_108 = arith.constant 0 : index
    %c0_109 = arith.constant 0 : index
    %c0_110 = arith.constant 0 : index
    %103 = tpu.strided_load %arg6[%c0_107, %c0_108, %c0_109, %c0_110] {strides = array<i32: 1, 1, 2, 1>} : memref<2x3x6x64xf32, #tpu.memory_space<vmem>>, vector<2x2x2x64xf32>
    %104 = vector.shape_cast %103 : vector<2x2x2x64xf32> to vector<8x64xf32>
    %c0_111 = arith.constant 0 : index
    %c0_112 = arith.constant 0 : index
    %105 = vector.load %arg8[%c0_111, %c0_112] : memref<32x576xf32, #tpu.memory_space<vmem>>, vector<8x64xf32>
    tpu.vector_store %arg8[%c0_111, %c0_112], %104 {strides = array<i32>} : memref<32x576xf32, #tpu.memory_space<vmem>>, vector<8x64xf32>,
    %c0_113 = arith.constant 0 : index
    %c0_114 = arith.constant 0 : index
    %c1_115 = arith.constant 1 : index
    %c0_116 = arith.constant 0 : index
    %106 = tpu.strided_load %arg6[%c0_113, %c0_114, %c1_115, %c0_116] {strides = array<i32: 1, 1, 2, 1>} : memref<2x3x6x64xf32, #tpu.memory_space<vmem>>, vector<2x2x2x64xf32>
    %107 = vector.shape_cast %106 : vector<2x2x2x64xf32> to vector<8x64xf32>
    %c0_117 = arith.constant 0 : index
    %c64_118 = arith.constant 64 : index
    %108 = vector.load %arg8[%c0_117, %c64_118] : memref<32x576xf32, #tpu.memory_space<vmem>>, vector<8x64xf32>
    tpu.vector_store %arg8[%c0_117, %c64_118], %107 {strides = array<i32>} : memref<32x576xf32, #tpu.memory_space<vmem>>, vector<8x64xf32>,
    %c0_119 = arith.constant 0 : index
    %c0_120 = arith.constant 0 : index
    %c2_121 = arith.constant 2 : index
    %c0_122 = arith.constant 0 : index
    %109 = tpu.strided_load %arg6[%c0_119, %c0_120, %c2_121, %c0_122] {strides = array<i32: 1, 1, 2, 1>} : memref<2x3x6x64xf32, #tpu.memory_space<vmem>>, vector<2x2x2x64xf32>
    %110 = vector.shape_cast %109 : vector<2x2x2x64xf32> to vector<8x64xf32>
    %c0_123 = arith.constant 0 : index
    %c128_124 = arith.constant 128 : index
    %111 = vector.load %arg8[%c0_123, %c128_124] : memref<32x576xf32, #tpu.memory_space<vmem>>, vector<8x64xf32>
    tpu.vector_store %arg8[%c0_123, %c128_124], %110 {strides = array<i32>} : memref<32x576xf32, #tpu.memory_space<vmem>>, vector<8x64xf32>,
    %c0_125 = arith.constant 0 : index
    %c0_126 = arith.constant 0 : index
    %c0_127 = arith.constant 0 : index
    %c0_128 = arith.constant 0 : index
    %112 = tpu.strided_load %arg7[%c0_125, %c0_126, %c0_127, %c0_128] {strides = array<i32: 1, 1, 2, 1>} : memref<2x2x6x64xf32, #tpu.memory_space<vmem>>, vector<2x2x2x64xf32>
    %113 = vector.shape_cast %112 : vector<2x2x2x64xf32> to vector<8x64xf32>
    %c0_129 = arith.constant 0 : index
    %c192_130 = arith.constant 192 : index
    %114 = vector.load %arg8[%c0_129, %c192_130] : memref<32x576xf32, #tpu.memory_space<vmem>>, vector<8x64xf32>
    tpu.vector_store %arg8[%c0_129, %c192_130], %113 {strides = array<i32>} : memref<32x576xf32, #tpu.memory_space<vmem>>, vector<8x64xf32>,
    %c0_131 = arith.constant 0 : index
    %c0_132 = arith.constant 0 : index
    %c1_133 = arith.constant 1 : index
    %c0_134 = arith.constant 0 : index
    %115 = tpu.strided_load %arg7[%c0_131, %c0_132, %c1_133, %c0_134] {strides = array<i32: 1, 1, 2, 1>} : memref<2x2x6x64xf32, #tpu.memory_space<vmem>>, vector<2x2x2x64xf32>
    %116 = vector.shape_cast %115 : vector<2x2x2x64xf32> to vector<8x64xf32>
    %c0_135 = arith.constant 0 : index
    %c256_136 = arith.constant 256 : index
    %117 = vector.load %arg8[%c0_135, %c256_136] : memref<32x576xf32, #tpu.memory_space<vmem>>, vector<8x64xf32>
    tpu.vector_store %arg8[%c0_135, %c256_136], %116 {strides = array<i32>} : memref<32x576xf32, #tpu.memory_space<vmem>>, vector<8x64xf32>,
    %c0_137 = arith.constant 0 : index
    %c0_138 = arith.constant 0 : index
    %c2_139 = arith.constant 2 : index
    %c0_140 = arith.constant 0 : index
    %118 = tpu.strided_load %arg7[%c0_137, %c0_138, %c2_139, %c0_140] {strides = array<i32: 1, 1, 2, 1>} : memref<2x2x6x64xf32, #tpu.memory_space<vmem>>, vector<2x2x2x64xf32>
    %119 = vector.shape_cast %118 : vector<2x2x2x64xf32> to vector<8x64xf32>
    %c0_141 = arith.constant 0 : index
    %c320 = arith.constant 320 : index
    %120 = vector.load %arg8[%c0_141, %c320] : memref<32x576xf32, #tpu.memory_space<vmem>>, vector<8x64xf32>
    tpu.vector_store %arg8[%c0_141, %c320], %119 {strides = array<i32>} : memref<32x576xf32, #tpu.memory_space<vmem>>, vector<8x64xf32>,
    %c0_142 = arith.constant 0 : index
    %c1_143 = arith.constant 1 : index
    %c0_144 = arith.constant 0 : index
    %c0_145 = arith.constant 0 : index
    %121 = tpu.strided_load %arg6[%c0_142, %c1_143, %c0_144, %c0_145] {strides = array<i32: 1, 1, 2, 1>} : memref<2x3x6x64xf32, #tpu.memory_space<vmem>>, vector<2x2x2x64xf32>
    %122 = vector.shape_cast %121 : vector<2x2x2x64xf32> to vector<8x64xf32>
    %c0_146 = arith.constant 0 : index
    %c384 = arith.constant 384 : index
    %123 = vector.load %arg8[%c0_146, %c384] : memref<32x576xf32, #tpu.memory_space<vmem>>, vector<8x64xf32>
    tpu.vector_store %arg8[%c0_146, %c384], %122 {strides = array<i32>} : memref<32x576xf32, #tpu.memory_space<vmem>>, vector<8x64xf32>,
    %c0_147 = arith.constant 0 : index
    %c1_148 = arith.constant 1 : index
    %c1_149 = arith.constant 1 : index
    %c0_150 = arith.constant 0 : index
    %124 = tpu.strided_load %arg6[%c0_147, %c1_148, %c1_149, %c0_150] {strides = array<i32: 1, 1, 2, 1>} : memref<2x3x6x64xf32, #tpu.memory_space<vmem>>, vector<2x2x2x64xf32>
    %125 = vector.shape_cast %124 : vector<2x2x2x64xf32> to vector<8x64xf32>
    %c0_151 = arith.constant 0 : index
    %c448 = arith.constant 448 : index
    %126 = vector.load %arg8[%c0_151, %c448] : memref<32x576xf32, #tpu.memory_space<vmem>>, vector<8x64xf32>
    tpu.vector_store %arg8[%c0_151, %c448], %125 {strides = array<i32>} : memref<32x576xf32, #tpu.memory_space<vmem>>, vector<8x64xf32>,
    %c0_152 = arith.constant 0 : index
    %c1_153 = arith.constant 1 : index
    %c2_154 = arith.constant 2 : index
    %c0_155 = arith.constant 0 : index
    %127 = tpu.strided_load %arg6[%c0_152, %c1_153, %c2_154, %c0_155] {strides = array<i32: 1, 1, 2, 1>} : memref<2x3x6x64xf32, #tpu.memory_space<vmem>>, vector<2x2x2x64xf32>
    %128 = vector.shape_cast %127 : vector<2x2x2x64xf32> to vector<8x64xf32>
    %c0_156 = arith.constant 0 : index
    %c512 = arith.constant 512 : index
    %129 = vector.load %arg8[%c0_156, %c512] : memref<32x576xf32, #tpu.memory_space<vmem>>, vector<8x64xf32>
    tpu.vector_store %arg8[%c0_156, %c512], %128 {strides = array<i32>} : memref<32x576xf32, #tpu.memory_space<vmem>>, vector<8x64xf32>,
    %c0_157 = arith.constant 0 : index
    %c0_158 = arith.constant 0 : index
    %130 = vector.load %arg8[%c0_157, %c0_158] : memref<32x576xf32, #tpu.memory_space<vmem>>, vector<8x576xf32>
    %c320_159 = arith.constant 320 : index
    %c0_160 = arith.constant 0 : index
    %131 = vector.load %arg1[%c320_159, %c0_160] : memref<1024x128xf32, #tpu.memory_space<vmem>>, vector<576x128xf32>
    %cst_161 = arith.constant dense<0.000000e+00> : vector<8x128xf32>
    %132 = tpu.matmul %130, %131, %cst_161 {dimension_numbers = #tpu.dot_dimension_numbers<[1], [0], [0], [1], [0, 0, 1, 1], [], []>} : vector<8x576xf32>, vector<576x128xf32>, vector<8x128xf32> -> vector<8x128xf32>
    %c4 = arith.constant 4 : index
    %c0_162 = arith.constant 0 : index
    %133 = vector.load %arg2[%c4, %c0_162] : memref<8x128xf32, #tpu.memory_space<vmem>>, vector<1x128xf32>
    %c5 = arith.constant 5 : index
    %c0_163 = arith.constant 0 : index
    %134 = vector.load %arg2[%c5, %c0_163] : memref<8x128xf32, #tpu.memory_space<vmem>>, vector<1x128xf32>
    %cst_164 = arith.constant dense<0.000000e+00> : vector<128xf32>
    %135 = vector.multi_reduction <add>, %132, %cst_164 [0] : vector<8x128xf32> to vector<128xf32>
    %136 = vector.shape_cast %135 : vector<128xf32> to vector<1x128xf32>
    %cst_165 = arith.constant 8.000000e+00 : f32
    %137 = vector.broadcast %cst_165 : f32 to vector<1x128xf32>
    %138 = arith.divf %136, %137 : vector<1x128xf32>
    %139 = vector.broadcast %138 : vector<1x128xf32> to vector<8x128xf32>
    %140 = arith.subf %132, %139 : vector<8x128xf32>
    %141 = arith.mulf %140, %140 : vector<8x128xf32>
    %cst_166 = arith.constant dense<0.000000e+00> : vector<128xf32>
    %142 = vector.multi_reduction <add>, %141, %cst_166 [0] : vector<8x128xf32> to vector<128xf32>
    %143 = vector.shape_cast %142 : vector<128xf32> to vector<1x128xf32>
    %cst_167 = arith.constant 8.000000e+00 : f32
    %144 = vector.broadcast %cst_167 : f32 to vector<1x128xf32>
    %145 = arith.divf %143, %144 : vector<1x128xf32>
    %cst_168 = arith.constant 9.99999974E-6 : f32
    %146 = vector.broadcast %cst_168 : f32 to vector<1x128xf32>
    %147 = arith.addf %145, %146 : vector<1x128xf32>
    %148 = math.rsqrt %147 : vector<1x128xf32>
    %149 = vector.broadcast %148 : vector<1x128xf32> to vector<8x128xf32>
    %150 = arith.mulf %140, %149 : vector<8x128xf32>
    %151 = vector.broadcast %133 : vector<1x128xf32> to vector<8x128xf32>
    %152 = arith.mulf %150, %151 : vector<8x128xf32>
    %153 = vector.broadcast %134 : vector<1x128xf32> to vector<8x128xf32>
    %154 = arith.addf %152, %153 : vector<8x128xf32>
    %cst_169 = arith.constant 0.000000e+00 : f32
    %155 = vector.broadcast %cst_169 : f32 to vector<8x128xf32>
    %156 = arith.maximumf %154, %155 : vector<8x128xf32>
    %157 = vector.shape_cast %156 : vector<8x128xf32> to vector<2x4x128xf32>
    %cst_170 = arith.constant dense<0.000000e+00> : vector<2x128xf32>
    %158 = vector.multi_reduction <add>, %157, %cst_170 [1] : vector<2x4x128xf32> to vector<2x128xf32>
    %cst_171 = arith.constant 4.000000e+00 : f32
    %159 = vector.broadcast %cst_171 : f32 to vector<2x128xf32>
    %160 = arith.divf %158, %159 : vector<2x128xf32>
    %c896 = arith.constant 896 : index
    %c0_172 = arith.constant 0 : index
    %161 = vector.load %arg1[%c896, %c0_172] : memref<1024x128xf32, #tpu.memory_space<vmem>>, vector<128x32xf32>
    %cst_173 = arith.constant dense<0.000000e+00> : vector<2x32xf32>
    %162 = tpu.matmul %160, %161, %cst_173 {dimension_numbers = #tpu.dot_dimension_numbers<[1], [0], [0], [1], [0, 0, 1, 1], [], []>} : vector<2x128xf32>, vector<128x32xf32>, vector<2x32xf32> -> vector<2x32xf32>
    %c6 = arith.constant 6 : index
    %c0_174 = arith.constant 0 : index
    %163 = vector.load %arg2[%c6, %c0_174] : memref<8x128xf32, #tpu.memory_space<vmem>>, vector<1x32xf32>
    %164 = vector.broadcast %163 : vector<1x32xf32> to vector<2x32xf32>
    %165 = arith.addf %162, %164 : vector<2x32xf32>
    %c0_175 = arith.constant 0 : index
    %c0_176 = arith.constant 0 : index
    %166 = vector.load %arg3[%c0_175, %c0_176] : memref<2x32xf32, #tpu.memory_space<vmem>>, vector<2x32xf32>
    tpu.vector_store %arg3[%c0_175, %c0_176], %165 {strides = array<i32>} : memref<2x32xf32, #tpu.memory_space<vmem>>, vector<2x32xf32>,
    return
  }
}

</mosaic_0001>

<llo_original>
// kernel: image_encoder_forward.1
$region0: #{image_encoder_forward.1}
  #allocation0 [shape = 'u32[]', space=smem, size = 0x4, offset = 0x4, fixed_abs, tag = 'smem constant byte address 0x4 - core index']
  #allocation1 [shape = 'u32[144,128]{1,0:T(1,128)}', space=vmem, size = 0x12000, scoped, tag = 'internal scratch']
  #allocation2 [shape = 'f32[2,5,10,32]{3,2,1,0:T(8,128)}', space=vmem, size = 0x14000, scoped, tag = 'scratch operand']
  #allocation3 [shape = 'f32[2,4,10,32]{3,2,1,0:T(8,128)}', space=vmem, size = 0x10000, scoped, tag = 'scratch operand']
  #allocation4 [shape = 'f32[2,3,6,64]{3,2,1,0:T(8,128)}', space=vmem, size = 0x6000, scoped, tag = 'scratch operand']
  #allocation5 [shape = 'f32[2,2,6,64]{3,2,1,0:T(8,128)}', space=vmem, size = 0x4000, scoped, tag = 'scratch operand']
  #allocation6 [shape = 'f32[32,576]{1,0:T(8,128)}', space=vmem, size = 0x14000, scoped, tag = 'scratch operand']
  %s0 = inlined_call_operand.vmem [shape: f32[128,27], index: 0, kind: input, shape index: {}]
  %s1 = inlined_call_operand.vmem [shape: f32[1024,128], index: 1, kind: input, shape index: {}]
  %s2 = inlined_call_operand.vmem [shape: f32[8,128], index: 2, kind: input, shape index: {}]
  %s3 = inlined_call_operand.hbm [shape: f32[2,32], index: 3, kind: output, shape index: {}]
  %s4 = sld [smem:[#allocation0]]
  $region22: #{image_encoder_forward.1} parent=0
    _
  %s6 = ssub.s32 1, %s4
  %s7 = scalar_select 0, %s6, %s4
  $region1: #{image_encoder_forward.1} parent=0
    #allocation7 [shape = 'u8[1024]{0}', space=vmem, size = 0x400, scoped, tag = 'output window, operand 0, single buffered']
    #allocation8 [shape = 's32[1]{0}', space=sflag, size = 0x4, scoped, tag = 'scoped memory for image_encoder_forward.1']
    %8 = vsyncpa [#allocation8], 0
    // Predicated region
    $region2: #{image_encoder_forward.1} parent=1 // pred_check
      _
    $region3: #{image_encoder_forward.1} parent=1 // pred_check_branch
      %10 = sbr.rel (0) target = $region5
    $region4: #{image_encoder_forward.1} parent=1 // pred_region
      _
    $region5: #{image_encoder_forward.1} parent=1 // pred_fallthru
      _
    // Predicated region
    $region6: #{image_encoder_forward.1} parent=1 // pred_check
      _
    $region7: #{image_encoder_forward.1} parent=1 // pred_check_branch
      %12 = sbr.rel (0) target = $region9
    $region8: #{image_encoder_forward.1} parent=1 // pred_region
      _
    $region9: #{image_encoder_forward.1} parent=1 // pred_fallthru
      _
    // Predicated region
    $region10: #{image_encoder_forward.1} parent=1 // pred_check
      _
    $region11: #{image_encoder_forward.1} parent=1 // pred_check_branch
      %14 = sbr.rel (0) target = $region13
    $region12: #{image_encoder_forward.1} parent=1 // pred_region
      _
    $region13: #{image_encoder_forward.1} parent=1 // pred_fallthru
      _
    %v15 = vld [vmem:[%s0] sm:$0xff]
    %v16 = vld [vmem:[%s0 + $0x8] sm:$0xff]
    %v17 = vld [vmem:[%s0 + $0x10] sm:$0xff]
    %v18 = vld [vmem:[%s0 + $0x18] sm:$0xff]
    %v19 = vld [vmem:[%s0 + $0x20] sm:$0xff]
    %v20 = vld [vmem:[%s0 + $0x28] sm:$0xff]
    %v21 = vld [vmem:[%s0 + $0x30] sm:$0xff]
    %v22 = vld [vmem:[%s0 + $0x38] sm:$0xff]
    %v23 = vld [vmem:[%s0 + $0x40] sm:$0xff]
    %v24 = vld [vmem:[%s0 + $0x48] sm:$0xff]
    %v25 = vld [vmem:[%s0 + $0x50] sm:$0xff]
    %v26 = vld [vmem:[%s0 + $0x58] sm:$0xff]
    %v27 = vld [vmem:[%s0 + $0x60] sm:$0xff]
    %v28 = vld [vmem:[%s0 + $0x68] sm:$0xff]
    %v29 = vld [vmem:[%s0 + $0x70] sm:$0xff]
    %v30 = vld [vmem:[%s0 + $0x78] sm:$0xff]
    %v31 = vld [vmem:[%s1] sm:$0xff]
    %v32 = vld [vmem:[%s1 + $0x8] sm:$0xff]
    %v33 = vld [vmem:[%s1 + $0x10] sm:$0xff]
    %v34 = vld [vmem:[%s1 + $0x18] sm:$0x7]
    %vm35 = vcmask 220160
    %v37 = vsel %vm35, %v15, 0
    %v40 = vsel %vm35, %v16, 0
    %v43 = vsel %vm35, %v17, 0
    %v46 = vsel %vm35, %v18, 0
    %v49 = vsel %vm35, %v19, 0
    %v52 = vsel %vm35, %v20, 0
    %v55 = vsel %vm35, %v21, 0
    %v58 = vsel %vm35, %v22, 0
    %v61 = vsel %vm35, %v23, 0
    %v64 = vsel %vm35, %v24, 0
    %v67 = vsel %vm35, %v25, 0
    %v70 = vsel %vm35, %v26, 0
    %v73 = vsel %vm35, %v27, 0
    %v76 = vsel %vm35, %v28, 0
    %v79 = vsel %vm35, %v29, 0
    %v82 = vsel %vm35, %v30, 0
    %vm84 = vcmask 1042432
    %v86 = vsel %vm84, %v34, 0
    %88 = vmatprep.subr.mxu0 0.0
    %89 = vmatpush1.msra.mxu0 %v31
    %90 = vmatprep.subr.mxu0 0.0
    %91 = vmatpush1.msra.mxu0 %v32
    %92 = vmatprep.subr.mxu0 0.0
    %93 = vmatpush1.msra.mxu0 %v33
    %94 = vmatprep.subr.mxu0 0.0
    %95 = vmatpush1.msra.mxu0 %v86
    %96 = vmatprep.subr.mxu0 0.0
    %97 = vmatpush1.msra.mxu0 0.0
    %98 = vmatprep.subr.mxu0 0.0
    %99 = vmatpush1.msra.mxu0 0.0
    %100 = vmatprep.subr.mxu0 0.0
    %101 = vmatpush1.msra.mxu0 0.0
    %102 = vmatprep.subr.mxu0 0.0
    %103 = vmatpush1.msra.mxu0 0.0
    %104 = vmatprep.subr.mxu0 0.0
    %105 = vmatpush1.msra.mxu0 0.0
    %106 = vmatprep.subr.mxu0 0.0
    %107 = vmatpush1.msra.mxu0 0.0
    %108 = vmatprep.subr.mxu0 0.0
    %109 = vmatpush1.msra.mxu0 0.0
    %110 = vmatprep.subr.mxu0 0.0
    %111 = vmatpush1.msra.mxu0 0.0
    %112 = vmatprep.subr.mxu0 0.0
    %113 = vmatpush1.msra.mxu0 0.0
    %114 = vmatprep.subr.mxu0 0.0
    %115 = vmatpush1.msra.mxu0 0.0
    %116 = vmatprep.subr.mxu0 0.0
    %117 = vmatpush1.msra.mxu0 0.0
    %118 = vmatprep.subr.mxu0 0.0
    %119 = vmatpush1.msra.mxu0 0.0
    %120 = vmatprep.subr.mxu0 0.0
    %121 = vmatpush1.msra.mxu0 0.0
    %122 = vmatprep.subr.mxu0 0.0
    %123 = vmatpush1.msra.mxu0 0.0
    %124 = vmatprep.subr.mxu0 0.0
    %125 = vmatpush1.msra.mxu0 0.0
    %126 = vmatprep.subr.mxu0 0.0
    %127 = vmatpush1.msra.mxu0 0.0
    %128 = vmatprep.subr.mxu0 0.0
    %129 = vmatpush1.msra.mxu0 0.0
    %130 = vmatprep.subr.mxu0 0.0
    %131 = vmatpush1.msra.mxu0 0.0
    %132 = vmatprep.subr.mxu0 0.0
    %133 = vmatpush1.msra.mxu0 0.0
    %134 = vmatprep.subr.mxu0 0.0
    %135 = vmatpush1.msra.mxu0 0.0
    %136 = vmatprep.subr.mxu0 0.0
    %137 = vmatpush1.msra.mxu0 0.0
    %138 = vmatprep.subr.mxu0 0.0
    %139 = vmatpush1.msra.mxu0 0.0
    %140 = vmatprep.subr.mxu0 0.0
    %141 = vmatpush1.msra.mxu0 0.0
    %142 = vmatprep.subr.mxu0 0.0
    %143 = vmatpush1.msra.mxu0 0.0
    %144 = vmatprep.subr.mxu0 0.0
    %145 = vmatpush1.msra.mxu0 0.0
    %146 = vmatprep.subr.mxu0 0.0
    %147 = vmatpush1.msra.mxu0 0.0
    %148 = vmatprep.subr.mxu0 0.0
    %149 = vmatpush1.msra.mxu0 0.0
    %150 = vmatprep.subr.mxu0 0.0
    %151 = vmatpush1.msra.mxu0 0.0
    %152 = vmatprep.mubr.f32.mxu0 0.0
    %153 = vmatmul.mubr.f32.gmra.mrb[0].mxu0 %v37
    %v154 = vpop.f32.mrb[0].mxu0
    %v155 = vadd.f32 0.0, %v154
    %v156 = vpop.f32.mrb[0].mxu0
    %157 = vmatprep.mubr.f32.mxu0 0.0
    %158 = vmatmul.mubr.f32.gmra.mrb[0].mxu0 %v40
    %v159 = vpop.f32.mrb[0].mxu0
    %v160 = vadd.f32 0.0, %v159
    %v161 = vpop.f32.mrb[0].mxu0
    %162 = vmatprep.mubr.f32.mxu0 0.0
    %163 = vmatmul.mubr.f32.gmra.mrb[0].mxu0 %v43
    %v164 = vpop.f32.mrb[0].mxu0
    %v165 = vadd.f32 0.0, %v164
    %v166 = vpop.f32.mrb[0].mxu0
    %167 = vmatprep.mubr.f32.mxu0 0.0
    %168 = vmatmul.mubr.f32.gmra.mrb[0].mxu0 %v46
    %v169 = vpop.f32.mrb[0].mxu0
    %v170 = vadd.f32 0.0, %v169
    %v171 = vpop.f32.mrb[0].mxu0
    %172 = vmatprep.mubr.f32.mxu0 0.0
    %173 = vmatmul.mubr.f32.gmra.mrb[0].mxu0 %v49
    %v174 = vpop.f32.mrb[0].mxu0
    %v175 = vadd.f32 0.0, %v174
    %v176 = vpop.f32.mrb[0].mxu0
    %177 = vmatprep.mubr.f32.mxu0 0.0
    %178 = vmatmul.mubr.f32.gmra.mrb[0].mxu0 %v52
    %v179 = vpop.f32.mrb[0].mxu0
    %v180 = vadd.f32 0.0, %v179
    %v181 = vpop.f32.mrb[0].mxu0
    %182 = vmatprep.mubr.f32.mxu0 0.0
    %183 = vmatmul.mubr.f32.gmra.mrb[0].mxu0 %v55
    %v184 = vpop.f32.mrb[0].mxu0
    %v185 = vadd.f32 0.0, %v184
    %v186 = vpop.f32.mrb[0].mxu0
    %187 = vmatprep.mubr.f32.mxu0 0.0
    %188 = vmatmul.mubr.f32.gmra.mrb[0].mxu0 %v58
    %v189 = vpop.f32.mrb[0].mxu0
    %v190 = vadd.f32 0.0, %v189
    %v191 = vpop.f32.mrb[0].mxu0
    %192 = vmatprep.mubr.f32.mxu0 0.0
    %193 = vmatmul.mubr.f32.gmra.mrb[0].mxu0 %v61
    %v194 = vpop.f32.mrb[0].mxu0
    %v195 = vadd.f32 0.0, %v194
    %v196 = vpop.f32.mrb[0].mxu0
    %197 = vmatprep.mubr.f32.mxu0 0.0
    %198 = vmatmul.mubr.f32.gmra.mrb[0].mxu0 %v64
    %v199 = vpop.f32.mrb[0].mxu0
    %v200 = vadd.f32 0.0, %v199
    %v201 = vpop.f32.mrb[0].mxu0
    %202 = vmatprep.mubr.f32.mxu0 0.0
    %203 = vmatmul.mubr.f32.gmra.mrb[0].mxu0 %v67
    %v204 = vpop.f32.mrb[0].mxu0
    %v205 = vadd.f32 0.0, %v204
    %v206 = vpop.f32.mrb[0].mxu0
    %207 = vmatprep.mubr.f32.mxu0 0.0
    %208 = vmatmul.mubr.f32.gmra.mrb[0].mxu0 %v70
    %v209 = vpop.f32.mrb[0].mxu0
    %v210 = vadd.f32 0.0, %v209
    %v211 = vpop.f32.mrb[0].mxu0
    %212 = vmatprep.mubr.f32.mxu0 0.0
    %213 = vmatmul.mubr.f32.gmra.mrb[0].mxu0 %v73
    %v214 = vpop.f32.mrb[0].mxu0
    %v215 = vadd.f32 0.0, %v214
    %v216 = vpop.f32.mrb[0].mxu0
    %217 = vmatprep.mubr.f32.mxu0 0.0
    %218 = vmatmul.mubr.f32.gmra.mrb[0].mxu0 %v76
    %v219 = vpop.f32.mrb[0].mxu0
    %v220 = vadd.f32 0.0, %v219
    %v221 = vpop.f32.mrb[0].mxu0
    %222 = vmatprep.mubr.f32.mxu0 0.0
    %223 = vmatmul.mubr.f32.gmra.mrb[0].mxu0 %v79
    %v224 = vpop.f32.mrb[0].mxu0
    %v225 = vadd.f32 0.0, %v224
    %v226 = vpop.f32.mrb[0].mxu0
    %227 = vmatprep.mubr.f32.mxu0 0.0
    %228 = vmatmul.mubr.f32.gmra.mrb[0].mxu0 %v82
    %v229 = vpop.f32.mrb[0].mxu0
    %v230 = vadd.f32 0.0, %v229
    %v231 = vpop.f32.mrb[0].mxu0
    %232 = vdwg.mxu0
    %v233 = vld [vmem:[%s2] sm:$0x1]
    %v234 = vld [vmem:[%s2 + $0x1] sm:$0x1]
    %vm235 = vcmask 261120
    %v236 = vsel %vm235, %v155, 0.0
    %v237 = vsel %vm235, %v160, 0.0
    %v238 = vadd.f32 %v236, %v237
    %v239 = vsel %vm235, %v165, 0.0
    %v240 = vadd.f32 %v238, %v239
    %v241 = vsel %vm235, %v170, 0.0
    %v242 = vadd.f32 %v240, %v241
    %v243 = vsel %vm235, %v175, 0.0
    %v244 = vadd.f32 %v242, %v243
    %v245 = vsel %vm235, %v180, 0.0
    %v246 = vadd.f32 %v244, %v245
    %v247 = vsel %vm235, %v185, 0.0
    %v248 = vadd.f32 %v246, %v247
    %v249 = vsel %vm235, %v190, 0.0
    %v250 = vadd.f32 %v248, %v249
    %v251 = vsel %vm235, %v195, 0.0
    %v252 = vadd.f32 %v250, %v251
    %v253 = vsel %vm235, %v200, 0.0
    %v254 = vadd.f32 %v252, %v253
    %v255 = vsel %vm235, %v205, 0.0
    %v256 = vadd.f32 %v254, %v255
    %v257 = vsel %vm235, %v210, 0.0
    %v258 = vadd.f32 %v256, %v257
    %v259 = vsel %vm235, %v215, 0.0
    %v260 = vadd.f32 %v258, %v259
    %v261 = vsel %vm235, %v220, 0.0
    %v262 = vadd.f32 %v260, %v261
    %v263 = vsel %vm235, %v225, 0.0
    %v264 = vadd.f32 %v262, %v263
    %v265 = vsel %vm235, %v230, 0.0
    %v266 = vadd.f32 %v264, %v265
    %v267 = vrot.slane %v266, 4
    %v268 = vadd.f32 %v266, %v267
    %v269 = vrot.slane %v268, 2
    %v270 = vadd.f32 %v268, %v269
    %v271 = vrot.slane %v270, 1
    %v272 = vadd.f32 %v270, %v271
    %v273 = vrcp.pop 128.0
    %v274 = vmul.f32 %v272, %v273
    %v275 = vsub.f32 %v155, %v274
    %v276 = vsub.f32 %v160, %v274
    %v277 = vsub.f32 %v165, %v274
    %v278 = vsub.f32 %v170, %v274
    %v279 = vsub.f32 %v175, %v274
    %v280 = vsub.f32 %v180, %v274
    %v281 = vsub.f32 %v185, %v274
    %v282 = vsub.f32 %v190, %v274
    %v283 = vsub.f32 %v195, %v274
    %v284 = vsub.f32 %v200, %v274
    %v285 = vsub.f32 %v205, %v274
    %v286 = vsub.f32 %v210, %v274
    %v287 = vsub.f32 %v215, %v274
    %v288 = vsub.f32 %v220, %v274
    %v289 = vsub.f32 %v225, %v274
    %v290 = vsub.f32 %v230, %v274
    %v291 = vmul.f32 %v275, %v275
    %v292 = vmul.f32 %v276, %v276
    %v293 = vmul.f32 %v277, %v277
    %v294 = vmul.f32 %v278, %v278
    %v295 = vmul.f32 %v279, %v279
    %v296 = vmul.f32 %v280, %v280
    %v297 = vmul.f32 %v281, %v281
    %v298 = vmul.f32 %v282, %v282
    %v299 = vmul.f32 %v283, %v283
    %v300 = vmul.f32 %v284, %v284
    %v301 = vmul.f32 %v285, %v285
    %v302 = vmul.f32 %v286, %v286
    %v303 = vmul.f32 %v287, %v287
    %v304 = vmul.f32 %v288, %v288
    %v305 = vmul.f32 %v289, %v289
    %v306 = vmul.f32 %v290, %v290
    %v307 = vsel %vm235, %v291, 0.0
    %v308 = vsel %vm235, %v292, 0.0
    %v309 = vadd.f32 %v307, %v308
    %v310 = vsel %vm235, %v293, 0.0
    %v311 = vadd.f32 %v309, %v310
    %v312 = vsel %vm235, %v294, 0.0
    %v313 = vadd.f32 %v311, %v312
    %v314 = vsel %vm235, %v295, 0.0
    %v315 = vadd.f32 %v313, %v314
    %v316 = vsel %vm235, %v296, 0.0
    %v317 = vadd.f32 %v315, %v316
    %v318 = vsel %vm235, %v297, 0.0
    %v319 = vadd.f32 %v317, %v318
    %v320 = vsel %vm235, %v298, 0.0
    %v321 = vadd.f32 %v319, %v320
    %v322 = vsel %vm235, %v299, 0.0
    %v323 = vadd.f32 %v321, %v322
    %v324 = vsel %vm235, %v300, 0.0
    %v325 = vadd.f32 %v323, %v324
    %v326 = vsel %vm235, %v301, 0.0
    %v327 = vadd.f32 %v325, %v326
    %v328 = vsel %vm235, %v302, 0.0
    %v329 = vadd.f32 %v327, %v328
    %v330 = vsel %vm235, %v303, 0.0
    %v331 = vadd.f32 %v329, %v330
    %v332 = vsel %vm235, %v304, 0.0
    %v333 = vadd.f32 %v331, %v332
    %v334 = vsel %vm235, %v305, 0.0
    %v335 = vadd.f32 %v333, %v334
    %v336 = vsel %vm235, %v306, 0.0
    %v337 = vadd.f32 %v335, %v336
    %v338 = vrot.slane %v337, 4
    %v339 = vadd.f32 %v337, %v338
    %v340 = vrot.slane %v339, 2
    %v341 = vadd.f32 %v339, %v340
    %v342 = vrot.slane %v341, 1
    %v343 = vadd.f32 %v341, %v342
    %v344 = vmul.f32 %v343, %v273
    %v345 = vadd.f32 %v344, 1e-05
    %v346 = vrsqrt.pop %v345
    %v347 = vmul.f32 %v275, %v346
    %v348 = vmul.f32 %v276, %v346
    %v349 = vmul.f32 %v277, %v346
    %v350 = vmul.f32 %v278, %v346
    %v351 = vmul.f32 %v279, %v346
    %v352 = vmul.f32 %v280, %v346
    %v353 = vmul.f32 %v281, %v346
    %v354 = vmul.f32 %v282, %v346
    %v355 = vmul.f32 %v283, %v346
    %v356 = vmul.f32 %v284, %v346
    %v357 = vmul.f32 %v285, %v346
    %v358 = vmul.f32 %v286, %v346
    %v359 = vmul.f32 %v287, %v346
    %v360 = vmul.f32 %v288, %v346
    %v361 = vmul.f32 %v289, %v346
    %v362 = vmul.f32 %v290, %v346
    %v363 = vlaneseq
    %v364 = vshrl.u32 %v363, 7
    %v365 = vsub.s32 0, %v364
    %v366 = vrot.slane %v233, %v365
    %v367 = vmul.f32 %v347, %v366
    %v368 = vmul.f32 %v348, %v366
    %v369 = vmul.f32 %v349, %v366
    %v370 = vmul.f32 %v350, %v366
    %v371 = vmul.f32 %v351, %v366
    %v372 = vmul.f32 %v352, %v366
    %v373 = vmul.f32 %v353, %v366
    %v374 = vmul.f32 %v354, %v366
    %v375 = vmul.f32 %v355, %v366
    %v376 = vmul.f32 %v356, %v366
    %v377 = vmul.f32 %v357, %v366
    %v378 = vmul.f32 %v358, %v366
    %v379 = vmul.f32 %v359, %v366
    %v380 = vmul.f32 %v360, %v366
    %v381 = vmul.f32 %v361, %v366
    %v382 = vmul.f32 %v362, %v366
    %v383 = vlaneseq
    %v384 = vshrl.u32 %v383, 7
    %v385 = vsub.s32 0, %v384
    %v386 = vrot.slane %v234, %v385
    %v387 = vadd.f32 %v367, %v386
    %v388 = vadd.f32 %v368, %v386
    %v389 = vadd.f32 %v369, %v386
    %v390 = vadd.f32 %v370, %v386
    %v391 = vadd.f32 %v371, %v386
    %v392 = vadd.f32 %v372, %v386
    %v393 = vadd.f32 %v373, %v386
    %v394 = vadd.f32 %v374, %v386
    %v395 = vadd.f32 %v375, %v386
    %v396 = vadd.f32 %v376, %v386
    %v397 = vadd.f32 %v377, %v386
    %v398 = vadd.f32 %v378, %v386
    %v399 = vadd.f32 %v379, %v386
    %v400 = vadd.f32 %v380, %v386
    %v401 = vadd.f32 %v381, %v386
    %v402 = vadd.f32 %v382, %v386
    %v403 = vmax.f32 %v387, 0.0
    %v404 = vmax.f32 %v388, 0.0
    %v405 = vmax.f32 %v389, 0.0
    %v406 = vmax.f32 %v390, 0.0
    %v407 = vmax.f32 %v391, 0.0
    %v408 = vmax.f32 %v392, 0.0
    %v409 = vmax.f32 %v393, 0.0
    %v410 = vmax.f32 %v394, 0.0
    %v411 = vmax.f32 %v395, 0.0
    %v412 = vmax.f32 %v396, 0.0
    %v413 = vmax.f32 %v397, 0.0
    %v414 = vmax.f32 %v398, 0.0
    %v415 = vmax.f32 %v399, 0.0
    %v416 = vmax.f32 %v400, 0.0
    %v417 = vmax.f32 %v401, 0.0
    %v418 = vmax.f32 %v402, 0.0
    %419 = vst.msk [vmem:[#allocation2] sm:$0xff] %vm235, 0.0
    %vm420 = vcmask 254976
    %421 = vst.msk [vmem:[#allocation2 + $0x8] sm:$0x3] %vm420, 0.0
    %422 = vst.msk [vmem:[#allocation2 + $0x10] sm:$0xff] %vm235, 0.0
    %423 = vst.msk [vmem:[#allocation2 + $0x18] sm:$0x3] %vm420, 0.0
    %424 = vst.msk [vmem:[#allocation2 + $0x20] sm:$0xff] %vm235, 0.0
    %425 = vst.msk [vmem:[#allocation2 + $0x28] sm:$0x3] %vm420, 0.0
    %426 = vst.msk [vmem:[#allocation2 + $0x30] sm:$0xff] %vm235, 0.0
    %427 = vst.msk [vmem:[#allocation2 + $0x38] sm:$0x3] %vm420, 0.0
    %428 = vst.msk [vmem:[#allocation2 + $0x40] sm:$0xff] %vm235, 0.0
    %429 = vst.msk [vmem:[#allocation2 + $0x48] sm:$0x3] %vm420, 0.0
    %430 = vst.msk [vmem:[#allocation2 + $0x50] sm:$0xff] %vm235, 0.0
    %431 = vst.msk [vmem:[#allocation2 + $0x58] sm:$0x3] %vm420, 0.0
    %432 = vst.msk [vmem:[#allocation2 + $0x60] sm:$0xff] %vm235, 0.0
    %433 = vst.msk [vmem:[#allocation2 + $0x68] sm:$0x3] %vm420, 0.0
    %434 = vst.msk [vmem:[#allocation2 + $0x70] sm:$0xff] %vm235, 0.0
    %435 = vst.msk [vmem:[#allocation2 + $0x78] sm:$0x3] %vm420, 0.0
    %436 = vst.msk [vmem:[#allocation2 + $0x80] sm:$0xff] %vm235, 0.0
    %437 = vst.msk [vmem:[#allocation2 + $0x88] sm:$0x3] %vm420, 0.0
    %438 = vst.msk [vmem:[#allocation2 + $0x90] sm:$0xff] %vm235, 0.0
    %439 = vst.msk [vmem:[#allocation2 + $0x98] sm:$0x3] %vm420, 0.0
    %440 = vst.msk [vmem:[#allocation3] sm:$0xff] %vm235, 0.0
    %441 = vst.msk [vmem:[#allocation3 + $0x8] sm:$0x3] %vm420, 0.0
    %442 = vst.msk [vmem:[#allocation3 + $0x10] sm:$0xff] %vm235, 0.0
    %443 = vst.msk [vmem:[#allocation3 + $0x18] sm:$0x3] %vm420, 0.0
    %444 = vst.msk [vmem:[#allocation3 + $0x20] sm:$0xff] %vm235, 0.0
    %445 = vst.msk [vmem:[#allocation3 + $0x28] sm:$0x3] %vm420, 0.0
    %446 = vst.msk [vmem:[#allocation3 + $0x30] sm:$0xff] %vm235, 0.0
    %447 = vst.msk [vmem:[#allocation3 + $0x38] sm:$0x3] %vm420, 0.0
    %448 = vst.msk [vmem:[#allocation3 + $0x40] sm:$0xff] %vm235, 0.0
    %449 = vst.msk [vmem:[#allocation3 + $0x48] sm:$0x3] %vm420, 0.0
    %450 = vst.msk [vmem:[#allocation3 + $0x50] sm:$0xff] %vm235, 0.0
    %451 = vst.msk [vmem:[#allocation3 + $0x58] sm:$0x3] %vm420, 0.0
    %452 = vst.msk [vmem:[#allocation3 + $0x60] sm:$0xff] %vm235, 0.0
    %453 = vst.msk [vmem:[#allocation3 + $0x68] sm:$0x3] %vm420, 0.0
    %454 = vst.msk [vmem:[#allocation3 + $0x70] sm:$0xff] %vm235, 0.0
    %455 = vst.msk [vmem:[#allocation3 + $0x78] sm:$0x3] %vm420, 0.0
    %456 = vst.msk [vmem:[#allocation3 + $0x1] sm:$0xff] %vm235, %v403
    %457 = vst.msk [vmem:[#allocation3 + $0x11] sm:$0xff] %vm235, %v405
    %458 = vst.msk [vmem:[#allocation3 + $0x21] sm:$0xff] %vm235, %v407
    %459 = vst.msk [vmem:[#allocation3 + $0x31] sm:$0xff] %vm235, %v409
    %460 = vst.msk [vmem:[#allocation3 + $0x41] sm:$0xff] %vm235, %v411
    %461 = vst.msk [vmem:[#allocation3 + $0x51] sm:$0xff] %vm235, %v413
    %462 = vst.msk [vmem:[#allocation3 + $0x61] sm:$0xff] %vm235, %v415
    %463 = vst.msk [vmem:[#allocation3 + $0x71] sm:$0xff] %vm235, %v417
    %s464 = scalar_lea.vmem [#allocation2], 16
    %465 = vst.msk [vmem:[%s464 + $0x1] sm:$0xff] %vm235, %v404
    %466 = vst.msk [vmem:[%s464 + $0x11] sm:$0xff] %vm235, %v406
    %467 = vst.msk [vmem:[%s464 + $0x21] sm:$0xff] %vm235, %v408
    %468 = vst.msk [vmem:[%s464 + $0x31] sm:$0xff] %vm235, %v410
    %469 = vst.msk [vmem:[%s464 + $0x51] sm:$0xff] %vm235, %v412
    %470 = vst.msk [vmem:[%s464 + $0x61] sm:$0xff] %vm235, %v414
    %471 = vst.msk [vmem:[%s464 + $0x71] sm:$0xff] %vm235, %v416
    %472 = vst.msk [vmem:[%s464 + $0x81] sm:$0xff] %vm235, %v418
    %v473 = vld [vmem:[#allocation2] ss:$2 sm:$0xf]
    %s474 = scalar_lea.vmem [#allocation2], 16
    %v475 = vld [vmem:[%s474] ss:$2 sm:$0xf]
    %s476 = scalar_lea.vmem [#allocation2], 32
    %v477 = vld [vmem:[%s476] ss:$2 sm:$0xf]
    %s478 = scalar_lea.vmem [#allocation2], 48
    %v479 = vld [vmem:[%s478] ss:$2 sm:$0xf]
    %s480 = scalar_lea.vmem [#allocation2], 80
    %v481 = vld [vmem:[%s480] ss:$2 sm:$0xf]
    %s482 = scalar_lea.vmem [#allocation2], 96
    %v483 = vld [vmem:[%s482] ss:$2 sm:$0xf]
    %s484 = scalar_lea.vmem [#allocation2], 112
    %v485 = vld [vmem:[%s484] ss:$2 sm:$0xf]
    %s486 = scalar_lea.vmem [#allocation2], 128
    %v487 = vld [vmem:[%s486] ss:$2 sm:$0xf]
    %v496 = vcombine.low %v473, %v475
    %v497 = vcombine.low %v477, %v479
    %v498 = vcombine.low %v481, %v483
    %v499 = vcombine.low %v485, %v487
    %504 = vst.msk [vmem:[#allocation6] sm:$0xff] %vm235, %v496
    %505 = vst.msk [vmem:[#allocation6 + $0x28] sm:$0xff] %vm235, %v497
    %506 = vst.msk [vmem:[#allocation6 + $0x50] sm:$0xff] %vm235, %v498
    %507 = vst.msk [vmem:[#allocation6 + $0x78] sm:$0xff] %vm235, %v499
    %s508 = scalar_lea.vmem [#allocation2], 1
    %v509 = vld [vmem:[%s508] ss:$2 sm:$0xf]
    %s510 = scalar_lea.vmem [#allocation2], 17
    %v511 = vld [vmem:[%s510] ss:$2 sm:$0xf]
    %s512 = scalar_lea.vmem [#allocation2], 33
    %v513 = vld [vmem:[%s512] ss:$2 sm:$0xf]
    %s514 = scalar_lea.vmem [#allocation2], 49
    %v515 = vld [vmem:[%s514] ss:$2 sm:$0xf]
    %s516 = scalar_lea.vmem [#allocation2], 81
    %v517 = vld [vmem:[%s516] ss:$2 sm:$0xf]
    %s518 = scalar_lea.vmem [#allocation2], 97
    %v519 = vld [vmem:[%s518] ss:$2 sm:$0xf]
    %s520 = scalar_lea.vmem [#allocation2], 113
    %v521 = vld [vmem:[%s520] ss:$2 sm:$0xf]
    %s522 = scalar_lea.vmem [#allocation2], 129
    %v523 = vld [vmem:[%s522] ss:$2 sm:$0xf]
    %v532 = vcombine.low %v509, %v511
    %v533 = vcombine.low %v513, %v515
    %v534 = vcombine.low %v517, %v519
    %v535 = vcombine.low %v521, %v523
    %536 = vrot.lane.b32.xlu0 %v532, 32
    %v537 = vpop.permute.xlu0 %536
    %538 = vrot.lane.b32.xlu0 %v533, 32
    %v539 = vpop.permute.xlu0 %538
    %540 = vrot.lane.b32.xlu0 %v534, 32
    %v541 = vpop.permute.xlu0 %540
    %542 = vrot.lane.b32.xlu0 %v535, 32
    %v543 = vpop.permute.xlu0 %542
    %vm548 = vcmask 523520
    %549 = vst.msk [vmem:[#allocation6] sm:$0xff] %vm548, %v537
    %550 = vst.msk [vmem:[#allocation6 + $0x28] sm:$0xff] %vm548, %v539
    %551 = vst.msk [vmem:[#allocation6 + $0x50] sm:$0xff] %vm548, %v541
    %552 = vst.msk [vmem:[#allocation6 + $0x78] sm:$0xff] %vm548, %v543
    %s553 = scalar_lea.vmem [#allocation2], 2
    %v554 = vld [vmem:[%s553] ss:$2 sm:$0xf]
    %s555 = scalar_lea.vmem [#allocation2], 18
    %v556 = vld [vmem:[%s555] ss:$2 sm:$0xf]
    %s557 = scalar_lea.vmem [#allocation2], 34
    %v558 = vld [vmem:[%s557] ss:$2 sm:$0xf]
    %s559 = scalar_lea.vmem [#allocation2], 50
    %v560 = vld [vmem:[%s559] ss:$2 sm:$0xf]
    %s561 = scalar_lea.vmem [#allocation2], 82
    %v562 = vld [vmem:[%s561] ss:$2 sm:$0xf]
    %s563 = scalar_lea.vmem [#allocation2], 98
    %v564 = vld [vmem:[%s563] ss:$2 sm:$0xf]
    %s565 = scalar_lea.vmem [#allocation2], 114
    %v566 = vld [vmem:[%s565] ss:$2 sm:$0xf]
    %s567 = scalar_lea.vmem [#allocation2], 130
    %v568 = vld [vmem:[%s567] ss:$2 sm:$0xf]
    %v577 = vcombine.low %v554, %v556
    %v578 = vcombine.low %v558, %v560
    %v579 = vcombine.low %v562, %v564
    %v580 = vcombine.low %v566, %v568
    %581 = vrot.lane.b32.xlu0 %v577, 64
    %v582 = vpop.permute.xlu0 %581
    %583 = vrot.lane.b32.xlu0 %v578, 64
    %v584 = vpop.permute.xlu0 %583
    %585 = vrot.lane.b32.xlu0 %v579, 64
    %v586 = vpop.permute.xlu0 %585
    %587 = vrot.lane.b32.xlu0 %v580, 64
    %v588 = vpop.permute.xlu0 %587
    %vm593 = vcmask 785920
    %594 = vst.msk [vmem:[#allocation6] sm:$0xff] %vm593, %v582
    %595 = vst.msk [vmem:[#allocation6 + $0x28] sm:$0xff] %vm593, %v584
    %596 = vst.msk [vmem:[#allocation6 + $0x50] sm:$0xff] %vm593, %v586
    %597 = vst.msk [vmem:[#allocation6 + $0x78] sm:$0xff] %vm593, %v588
    %v598 = vld [vmem:[#allocation3] ss:$2 sm:$0xf]
    %s599 = scalar_lea.vmem [#allocation3], 16
    %v600 = vld [vmem:[%s599] ss:$2 sm:$0xf]
    %s601 = scalar_lea.vmem [#allocation3], 32
    %v602 = vld [vmem:[%s601] ss:$2 sm:$0xf]
    %s603 = scalar_lea.vmem [#allocation3], 48
    %v604 = vld [vmem:[%s603] ss:$2 sm:$0xf]
    %s605 = scalar_lea.vmem [#allocation3], 64
    %v606 = vld [vmem:[%s605] ss:$2 sm:$0xf]
    %s607 = scalar_lea.vmem [#allocation3], 80
    %v608 = vld [vmem:[%s607] ss:$2 sm:$0xf]
    %s609 = scalar_lea.vmem [#allocation3], 96
    %v610 = vld [vmem:[%s609] ss:$2 sm:$0xf]
    %s611 = scalar_lea.vmem [#allocation3], 112
    %v612 = vld [vmem:[%s611] ss:$2 sm:$0xf]
    %v621 = vcombine.low %v598, %v600
    %v622 = vcombine.low %v602, %v604
    %v623 = vcombine.low %v606, %v608
    %v624 = vcombine.low %v610, %v612
    %625 = vrot.lane.b32.xlu0 %v621, 96
    %v626 = vpop.permute.xlu0 %625
    %627 = vrot.lane.b32.xlu0 %v622, 96
    %v628 = vpop.permute.xlu0 %627
    %629 = vrot.lane.b32.xlu0 %v623, 96
    %v630 = vpop.permute.xlu0 %629
    %631 = vrot.lane.b32.xlu0 %v624, 96
    %v632 = vpop.permute.xlu0 %631
    %vm637 = vcmask 1048320
    %638 = vst.msk [vmem:[#allocation6] sm:$0xff] %vm637, %v626
    %639 = vst.msk [vmem:[#allocation6 + $0x28] sm:$0xff] %vm637, %v628
    %640 = vst.msk [vmem:[#allocation6 + $0x50] sm:$0xff] %vm637, %v630
    %641 = vst.msk [vmem:[#allocation6 + $0x78] sm:$0xff] %vm637, %v632
    %s642 = scalar_lea.vmem [#allocation3], 1
    %v643 = vld [vmem:[%s642] ss:$2 sm:$0xf]
    %s644 = scalar_lea.vmem [#allocation3], 17
    %v645 = vld [vmem:[%s644] ss:$2 sm:$0xf]
    %s646 = scalar_lea.vmem [#allocation3], 33
    %v647 = vld [vmem:[%s646] ss:$2 sm:$0xf]
    %s648 = scalar_lea.vmem [#allocation3], 49
    %v649 = vld [vmem:[%s648] ss:$2 sm:$0xf]
    %s650 = scalar_lea.vmem [#allocation3], 65
    %v651 = vld [vmem:[%s650] ss:$2 sm:$0xf]
    %s652 = scalar_lea.vmem [#allocation3], 81
    %v653 = vld [vmem:[%s652] ss:$2 sm:$0xf]
    %s654 = scalar_lea.vmem [#allocation3], 97
    %v655 = vld [vmem:[%s654] ss:$2 sm:$0xf]
    %s656 = scalar_lea.vmem [#allocation3], 113
    %v657 = vld [vmem:[%s656] ss:$2 sm:$0xf]
    %v666 = vcombine.low %v643, %v645
    %v667 = vcombine.low %v647, %v649
    %v668 = vcombine.low %v651, %v653
    %v669 = vcombine.low %v655, %v657
    %674 = vst.msk [vmem:[#allocation6 + $0x8] sm:$0xff] %vm235, %v666
    %675 = vst.msk [vmem:[#allocation6 + $0x30] sm:$0xff] %vm235, %v667
    %676 = vst.msk [vmem:[#allocation6 + $0x58] sm:$0xff] %vm235, %v668
    %677 = vst.msk [vmem:[#allocation6 + $0x80] sm:$0xff] %vm235, %v669
    %s678 = scalar_lea.vmem [#allocation3], 2
    %v679 = vld [vmem:[%s678] ss:$2 sm:$0xf]
    %s680 = scalar_lea.vmem [#allocation3], 18
    %v681 = vld [vmem:[%s680] ss:$2 sm:$0xf]
    %s682 = scalar_lea.vmem [#allocation3], 34
    %v683 = vld [vmem:[%s682] ss:$2 sm:$0xf]
    %s684 = scalar_lea.vmem [#allocation3], 50
    %v685 = vld [vmem:[%s684] ss:$2 sm:$0xf]
    %s686 = scalar_lea.vmem [#allocation3], 66
    %v687 = vld [vmem:[%s686] ss:$2 sm:$0xf]
    %s688 = scalar_lea.vmem [#allocation3], 82
    %v689 = vld [vmem:[%s688] ss:$2 sm:$0xf]
    %s690 = scalar_lea.vmem [#allocation3], 98
    %v691 = vld [vmem:[%s690] ss:$2 sm:$0xf]
    %s692 = scalar_lea.vmem [#allocation3], 114
    %v693 = vld [vmem:[%s692] ss:$2 sm:$0xf]
    %v702 = vcombine.low %v679, %v681
    %v703 = vcombine.low %v683, %v685
    %v704 = vcombine.low %v687, %v689
    %v705 = vcombine.low %v691, %v693
    %706 = vrot.lane.b32.xlu0 %v702, 32
    %v707 = vpop.permute.xlu0 %706
    %708 = vrot.lane.b32.xlu0 %v703, 32
    %v709 = vpop.permute.xlu0 %708
    %710 = vrot.lane.b32.xlu0 %v704, 32
    %v711 = vpop.permute.xlu0 %710
    %712 = vrot.lane.b32.xlu0 %v705, 32
    %v713 = vpop.permute.xlu0 %712
    %718 = vst.msk [vmem:[#allocation6 + $0x8] sm:$0xff] %vm548, %v707
    %719 = vst.msk [vmem:[#allocation6 + $0x30] sm:$0xff] %vm548, %v709
    %720 = vst.msk [vmem:[#allocation6 + $0x58] sm:$0xff] %vm548, %v711
    %721 = vst.msk [vmem:[#allocation6 + $0x80] sm:$0xff] %vm548, %v713
    %v722 = vld [vmem:[%s464] ss:$2 sm:$0xf]
    %s723 = scalar_lea.vmem %s464, 16 [#allocation2]
    %v724 = vld [vmem:[%s723] ss:$2 sm:$0xf]
    %s725 = scalar_lea.vmem %s464, 32 [#allocation2]
    %v726 = vld [vmem:[%s725] ss:$2 sm:$0xf]
    %s727 = scalar_lea.vmem %s464, 48 [#allocation2]
    %v728 = vld [vmem:[%s727] ss:$2 sm:$0xf]
    %s729 = scalar_lea.vmem %s464, 80 [#allocation2]
    %v730 = vld [vmem:[%s729] ss:$2 sm:$0xf]
    %s731 = scalar_lea.vmem %s464, 96 [#allocation2]
    %v732 = vld [vmem:[%s731] ss:$2 sm:$0xf]
    %s733 = scalar_lea.vmem %s464, 112 [#allocation2]
    %v734 = vld [vmem:[%s733] ss:$2 sm:$0xf]
    %s735 = scalar_lea.vmem %s464, 128 [#allocation2]
    %v736 = vld [vmem:[%s735] ss:$2 sm:$0xf]
    %v745 = vcombine.low %v722, %v724
    %v746 = vcombine.low %v726, %v728
    %v747 = vcombine.low %v730, %v732
    %v748 = vcombine.low %v734, %v736
    %749 = vrot.lane.b32.xlu0 %v745, 64
    %v750 = vpop.permute.xlu0 %749
    %751 = vrot.lane.b32.xlu0 %v746, 64
    %v752 = vpop.permute.xlu0 %751
    %753 = vrot.lane.b32.xlu0 %v747, 64
    %v754 = vpop.permute.xlu0 %753
    %755 = vrot.lane.b32.xlu0 %v748, 64
    %v756 = vpop.permute.xlu0 %755
    %761 = vst.msk [vmem:[#allocation6 + $0x8] sm:$0xff] %vm593, %v750
    %762 = vst.msk [vmem:[#allocation6 + $0x30] sm:$0xff] %vm593, %v752
    %763 = vst.msk [vmem:[#allocation6 + $0x58] sm:$0xff] %vm593, %v754
    %764 = vst.msk [vmem:[#allocation6 + $0x80] sm:$0xff] %vm593, %v756
    %s765 = scalar_lea.vmem %s464, 1 [#allocation2]
    %v766 = vld [vmem:[%s765] ss:$2 sm:$0xf]
    %s767 = scalar_lea.vmem %s464, 17 [#allocation2]
    %v768 = vld [vmem:[%s767] ss:$2 sm:$0xf]
    %s769 = scalar_lea.vmem %s464, 33 [#allocation2]
    %v770 = vld [vmem:[%s769] ss:$2 sm:$0xf]
    %s771 = scalar_lea.vmem %s464, 49 [#allocation2]
    %v772 = vld [vmem:[%s771] ss:$2 sm:$0xf]
    %s773 = scalar_lea.vmem %s464, 81 [#allocation2]
    %v774 = vld [vmem:[%s773] ss:$2 sm:$0xf]
    %s775 = scalar_lea.vmem %s464, 97 [#allocation2]
    %v776 = vld [vmem:[%s775] ss:$2 sm:$0xf]
    %s777 = scalar_lea.vmem %s464, 113 [#allocation2]
    %v778 = vld [vmem:[%s777] ss:$2 sm:$0xf]
    %s779 = scalar_lea.vmem %s464, 129 [#allocation2]
    %v780 = vld [vmem:[%s779] ss:$2 sm:$0xf]
    %v789 = vcombine.low %v766, %v768
    %v790 = vcombine.low %v770, %v772
    %v791 = vcombine.low %v774, %v776
    %v792 = vcombine.low %v778, %v780
    %793 = vrot.lane.b32.xlu0 %v789, 96
    %v794 = vpop.permute.xlu0 %793
    %795 = vrot.lane.b32.xlu0 %v790, 96
    %v796 = vpop.permute.xlu0 %795
    %797 = vrot.lane.b32.xlu0 %v791, 96
    %v798 = vpop.permute.xlu0 %797
    %799 = vrot.lane.b32.xlu0 %v792, 96
    %v800 = vpop.permute.xlu0 %799
    %805 = vst.msk [vmem:[#allocation6 + $0x8] sm:$0xff] %vm637, %v794
    %806 = vst.msk [vmem:[#allocation6 + $0x30] sm:$0xff] %vm637, %v796
    %807 = vst.msk [vmem:[#allocation6 + $0x58] sm:$0xff] %vm637, %v798
    %808 = vst.msk [vmem:[#allocation6 + $0x80] sm:$0xff] %vm637, %v800
    %s809 = scalar_lea.vmem %s464, 2 [#allocation2]
    %v810 = vld [vmem:[%s809] ss:$2 sm:$0xf]
    %s811 = scalar_lea.vmem %s464, 18 [#allocation2]
    %v812 = vld [vmem:[%s811] ss:$2 sm:$0xf]
    %s813 = scalar_lea.vmem %s464, 34 [#allocation2]
    %v814 = vld [vmem:[%s813] ss:$2 sm:$0xf]
    %s815 = scalar_lea.vmem %s464, 50 [#allocation2]
    %v816 = vld [vmem:[%s815] ss:$2 sm:$0xf]
    %s817 = scalar_lea.vmem %s464, 82 [#allocation2]
    %v818 = vld [vmem:[%s817] ss:$2 sm:$0xf]
    %s819 = scalar_lea.vmem %s464, 98 [#allocation2]
    %v820 = vld [vmem:[%s819] ss:$2 sm:$0xf]
    %s821 = scalar_lea.vmem %s464, 114 [#allocation2]
    %v822 = vld [vmem:[%s821] ss:$2 sm:$0xf]
    %s823 = scalar_lea.vmem %s464, 130 [#allocation2]
    %v824 = vld [vmem:[%s823] ss:$2 sm:$0xf]
    %v833 = vcombine.low %v810, %v812
    %v834 = vcombine.low %v814, %v816
    %v835 = vcombine.low %v818, %v820
    %v836 = vcombine.low %v822, %v824
    %841 = vst.msk [vmem:[#allocation6 + $0x10] sm:$0xff] %vm235, %v833
    %842 = vst.msk [vmem:[#allocation6 + $0x38] sm:$0xff] %vm235, %v834
    %843 = vst.msk [vmem:[#allocation6 + $0x60] sm:$0xff] %vm235, %v835
    %844 = vst.msk [vmem:[#allocation6 + $0x88] sm:$0xff] %vm235, %v836
    %v845 = vld [vmem:[#allocation6] sm:$0xff]
    %v846 = vld [vmem:[#allocation6 + $0x8] sm:$0xff]
    %v847 = vld [vmem:[#allocation6 + $0x10] sm:$0xff]
    %v848 = vld [vmem:[#allocation6 + $0x28] sm:$0xff]
    %v849 = vld [vmem:[#allocation6 + $0x30] sm:$0xff]
    %v850 = vld [vmem:[#allocation6 + $0x38] sm:$0xff]
    %v851 = vld [vmem:[#allocation6 + $0x50] sm:$0xff]
    %v852 = vld [vmem:[#allocation6 + $0x58] sm:$0xff]
    %v853 = vld [vmem:[#allocation6 + $0x60] sm:$0xff]
    %v854 = vld [vmem:[#allocation6 + $0x78] sm:$0xff]
    %v855 = vld [vmem:[#allocation6 + $0x80] sm:$0xff]
    %v856 = vld [vmem:[#allocation6 + $0x88] sm:$0xff]
    %v857 = vld [vmem:[%s1 + $0x20] sm:$0xff]
    %v858 = vld [vmem:[%s1 + $0x28] sm:$0xff]
    %v859 = vld [vmem:[%s1 + $0x30] sm:$0xff]
    %v860 = vld [vmem:[%s1 + $0x38] sm:$0xff]
    %v861 = vld [vmem:[%s1 + $0x40] sm:$0xff]
    %v862 = vld [vmem:[%s1 + $0x48] sm:$0xff]
    %v863 = vld [vmem:[%s1 + $0x50] sm:$0xff]
    %v864 = vld [vmem:[%s1 + $0x58] sm:$0xff]
    %v865 = vld [vmem:[%s1 + $0x60] sm:$0xff]
    %v866 = vld [vmem:[%s1 + $0x68] sm:$0xff]
    %v867 = vld [vmem:[%s1 + $0x70] sm:$0xff]
    %v868 = vld [vmem:[%s1 + $0x78] sm:$0xff]
    %v869 = vld [vmem:[%s1 + $0x80] sm:$0xff]
    %v870 = vld [vmem:[%s1 + $0x88] sm:$0xff]
    %v871 = vld [vmem:[%s1 + $0x90] sm:$0xff]
    %v872 = vld [vmem:[%s1 + $0x98] sm:$0xff]
    %v873 = vld [vmem:[%s1 + $0xa0] sm:$0xff]
    %v874 = vld [vmem:[%s1 + $0xa8] sm:$0xff]
    %v875 = vld [vmem:[%s1 + $0xb0] sm:$0xff]
    %v876 = vld [vmem:[%s1 + $0xb8] sm:$0xff]
    %v877 = vld [vmem:[%s1 + $0xc0] sm:$0xff]
    %v878 = vld [vmem:[%s1 + $0xc8] sm:$0xff]
    %v879 = vld [vmem:[%s1 + $0xd0] sm:$0xff]
    %v880 = vld [vmem:[%s1 + $0xd8] sm:$0xff]
    %v881 = vld [vmem:[%s1 + $0xe0] sm:$0xff]
    %v882 = vld [vmem:[%s1 + $0xe8] sm:$0xff]
    %v883 = vld [vmem:[%s1 + $0xf0] sm:$0xff]
    %v884 = vld [vmem:[%s1 + $0xf8] sm:$0xff]
    %v885 = vld [vmem:[%s1 + $0x100] sm:$0xff]
    %v886 = vld [vmem:[%s1 + $0x108] sm:$0xff]
    %v887 = vld [vmem:[%s1 + $0x110] sm:$0xff]
    %v888 = vld [vmem:[%s1 + $0x118] sm:$0xff]
    %v889 = vld [vmem:[%s1 + $0x120] sm:$0xff]
    %v890 = vld [vmem:[%s1 + $0x128] sm:$0xff]
    %v891 = vld [vmem:[%s1 + $0x130] sm:$0xff]
    %v892 = vld [vmem:[%s1 + $0x138] sm:$0xff]
    %v894 = vsel %vm235, %v847, 0
    %v897 = vsel %vm235, %v850, 0
    %v900 = vsel %vm235, %v853, 0
    %v903 = vsel %vm235, %v856, 0
    %905 = vmatprep.subr.mxu0 0.0
    %906 = vmatpush1.msra.mxu0 %v857
    %907 = vmatprep.subr.mxu0 0.0
    %908 = vmatpush1.msra.mxu0 %v858
    %909 = vmatprep.subr.mxu0 0.0
    %910 = vmatpush1.msra.mxu0 %v859
    %911 = vmatprep.subr.mxu0 0.0
    %912 = vmatpush1.msra.mxu0 %v860
    %913 = vmatprep.subr.mxu0 0.0
    %914 = vmatpush1.msra.mxu0 %v861
    %915 = vmatprep.subr.mxu0 0.0
    %916 = vmatpush1.msra.mxu0 %v862
    %917 = vmatprep.subr.mxu0 0.0
    %918 = vmatpush1.msra.mxu0 %v863
    %919 = vmatprep.subr.mxu0 0.0
    %920 = vmatpush1.msra.mxu0 %v864
    %921 = vmatprep.subr.mxu0 0.0
    %922 = vmatpush1.msra.mxu0 %v865
    %923 = vmatprep.subr.mxu0 0.0
    %924 = vmatpush1.msra.mxu0 %v866
    %925 = vmatprep.subr.mxu0 0.0
    %926 = vmatpush1.msra.mxu0 %v867
    %927 = vmatprep.subr.mxu0 0.0
    %928 = vmatpush1.msra.mxu0 %v868
    %929 = vmatprep.subr.mxu0 0.0
    %930 = vmatpush1.msra.mxu0 %v869
    %931 = vmatprep.subr.mxu0 0.0
    %932 = vmatpush1.msra.mxu0 %v870
    %933 = vmatprep.subr.mxu0 0.0
    %934 = vmatpush1.msra.mxu0 %v871
    %935 = vmatprep.subr.mxu0 0.0
    %936 = vmatpush1.msra.mxu0 %v872
    %937 = vmatprep.subr.mxu0 0.0
    %938 = vmatpush1.msra.mxu0 %v873
    %939 = vmatprep.subr.mxu0 0.0
    %940 = vmatpush1.msra.mxu0 %v874
    %941 = vmatprep.subr.mxu0 0.0
    %942 = vmatpush1.msra.mxu0 %v875
    %943 = vmatprep.subr.mxu0 0.0
    %944 = vmatpush1.msra.mxu0 %v876
    %945 = vmatprep.subr.mxu0 0.0
    %946 = vmatpush1.msra.mxu0 %v877
    %947 = vmatprep.subr.mxu0 0.0
    %948 = vmatpush1.msra.mxu0 %v878
    %949 = vmatprep.subr.mxu0 0.0
    %950 = vmatpush1.msra.mxu0 %v879
    %951 = vmatprep.subr.mxu0 0.0
    %952 = vmatpush1.msra.mxu0 %v880
    %953 = vmatprep.subr.mxu0 0.0
    %954 = vmatpush1.msra.mxu0 %v881
    %955 = vmatprep.subr.mxu0 0.0
    %956 = vmatpush1.msra.mxu0 %v882
    %957 = vmatprep.subr.mxu0 0.0
    %958 = vmatpush1.msra.mxu0 %v883
    %959 = vmatprep.subr.mxu0 0.0
    %960 = vmatpush1.msra.mxu0 %v884
    %961 = vmatprep.subr.mxu0 0.0
    %962 = vmatpush1.msra.mxu0 %v885
    %963 = vmatprep.subr.mxu0 0.0
    %964 = vmatpush1.msra.mxu0 %v886
    %965 = vmatprep.subr.mxu0 0.0
    %966 = vmatpush1.msra.mxu0 %v887
    %967 = vmatprep.subr.mxu0 0.0
    %968 = vmatpush1.msra.mxu0 %v888
    %969 = vmatprep.mubr.f32.mxu0 %v846
    %970 = vmatmul.mubr.f32.gmra.mrb[0].mxu0 %v845
    %v971 = vpop.f32.mrb[0].mxu0
    %v972 = vadd.f32 0.0, %v971
    %v973 = vpop.f32.mrb[0].mxu0
    %974 = vmatprep.mubr.f32.mxu0 %v849
    %975 = vmatmul.mubr.f32.gmra.mrb[0].mxu0 %v848
    %v976 = vpop.f32.mrb[0].mxu0
    %v977 = vadd.f32 0.0, %v976
    %v978 = vpop.f32.mrb[0].mxu0
    %979 = vmatprep.mubr.f32.mxu0 %v852
    %980 = vmatmul.mubr.f32.gmra.mrb[0].mxu0 %v851
    %v981 = vpop.f32.mrb[0].mxu0
    %v982 = vadd.f32 0.0, %v981
    %v983 = vpop.f32.mrb[0].mxu0
    %984 = vmatprep.mubr.f32.mxu0 %v855
    %985 = vmatmul.mubr.f32.gmra.mrb[0].mxu0 %v854
    %v986 = vpop.f32.mrb[0].mxu0
    %v987 = vadd.f32 0.0, %v986
    %v988 = vpop.f32.mrb[0].mxu0
    %989 = vdwg.mxu0
    %990 = vmatprep.subr.mxu0 0.0
    %991 = vmatpush1.msra.mxu0 %v889
    %992 = vmatprep.subr.mxu0 0.0
    %993 = vmatpush1.msra.mxu0 %v890
    %994 = vmatprep.subr.mxu0 0.0
    %995 = vmatpush1.msra.mxu0 %v891
    %996 = vmatprep.subr.mxu0 0.0
    %997 = vmatpush1.msra.mxu0 %v892
    %998 = vmatprep.subr.mxu0 0.0
    %999 = vmatpush1.msra.mxu0 0.0
    %1000 = vmatprep.subr.mxu0 0.0
    %1001 = vmatpush1.msra.mxu0 0.0
    %1002 = vmatprep.subr.mxu0 0.0
    %1003 = vmatpush1.msra.mxu0 0.0
    %1004 = vmatprep.subr.mxu0 0.0
    %1005 = vmatpush1.msra.mxu0 0.0
    %1006 = vmatprep.subr.mxu0 0.0
    %1007 = vmatpush1.msra.mxu0 0.0
    %1008 = vmatprep.subr.mxu0 0.0
    %1009 = vmatpush1.msra.mxu0 0.0
    %1010 = vmatprep.subr.mxu0 0.0
    %1011 = vmatpush1.msra.mxu0 0.0
    %1012 = vmatprep.subr.mxu0 0.0
    %1013 = vmatpush1.msra.mxu0 0.0
    %1014 = vmatprep.subr.mxu0 0.0
    %1015 = vmatpush1.msra.mxu0 0.0
    %1016 = vmatprep.subr.mxu0 0.0
    %1017 = vmatpush1.msra.mxu0 0.0
    %1018 = vmatprep.subr.mxu0 0.0
    %1019 = vmatpush1.msra.mxu0 0.0
    %1020 = vmatprep.subr.mxu0 0.0
    %1021 = vmatpush1.msra.mxu0 0.0
    %1022 = vmatprep.subr.mxu0 0.0
    %1023 = vmatpush1.msra.mxu0 0.0
    %1024 = vmatprep.subr.mxu0 0.0
    %1025 = vmatpush1.msra.mxu0 0.0
    %1026 = vmatprep.subr.mxu0 0.0
    %1027 = vmatpush1.msra.mxu0 0.0
    %1028 = vmatprep.subr.mxu0 0.0
    %1029 = vmatpush1.msra.mxu0 0.0
    %1030 = vmatprep.subr.mxu0 0.0
    %1031 = vmatpush1.msra.mxu0 0.0
    %1032 = vmatprep.subr.mxu0 0.0
    %1033 = vmatpush1.msra.mxu0 0.0
    %1034 = vmatprep.subr.mxu0 0.0
    %1035 = vmatpush1.msra.mxu0 0.0
    %1036 = vmatprep.subr.mxu0 0.0
    %1037 = vmatpush1.msra.mxu0 0.0
    %1038 = vmatprep.subr.mxu0 0.0
    %1039 = vmatpush1.msra.mxu0 0.0
    %1040 = vmatprep.subr.mxu0 0.0
    %1041 = vmatpush1.msra.mxu0 0.0
    %1042 = vmatprep.subr.mxu0 0.0
    %1043 = vmatpush1.msra.mxu0 0.0
    %1044 = vmatprep.subr.mxu0 0.0
    %1045 = vmatpush1.msra.mxu0 0.0
    %1046 = vmatprep.subr.mxu0 0.0
    %1047 = vmatpush1.msra.mxu0 0.0
    %1048 = vmatprep.subr.mxu0 0.0
    %1049 = vmatpush1.msra.mxu0 0.0
    %1050 = vmatprep.subr.mxu0 0.0
    %1051 = vmatpush1.msra.mxu0 0.0
    %1052 = vmatprep.subr.mxu0 0.0
    %1053 = vmatpush1.msra.mxu0 0.0
    %1054 = vmatprep.mubr.f32.mxu0 0.0
    %1055 = vmatmul.mubr.f32.gmra.mrb[0].mxu0 %v894
    %v1056 = vpop.f32.mrb[0].mxu0
    %v1057 = vadd.f32 %v972, %v1056
    %v1058 = vpop.f32.mrb[0].mxu0
    %1059 = vmatprep.mubr.f32.mxu0 0.0
    %1060 = vmatmul.mubr.f32.gmra.mrb[0].mxu0 %v897
    %v1061 = vpop.f32.mrb[0].mxu0
    %v1062 = vadd.f32 %v977, %v1061
    %v1063 = vpop.f32.mrb[0].mxu0
    %1064 = vmatprep.mubr.f32.mxu0 0.0
    %1065 = vmatmul.mubr.f32.gmra.mrb[0].mxu0 %v900
    %v1066 = vpop.f32.mrb[0].mxu0
    %v1067 = vadd.f32 %v982, %v1066
    %v1068 = vpop.f32.mrb[0].mxu0
    %1069 = vmatprep.mubr.f32.mxu0 0.0
    %1070 = vmatmul.mubr.f32.gmra.mrb[0].mxu0 %v903
    %v1071 = vpop.f32.mrb[0].mxu0
    %v1072 = vadd.f32 %v987, %v1071
    %v1073 = vpop.f32.mrb[0].mxu0
    %1074 = vdwg.mxu0
    %v1075 = vld [vmem:[%s2 + $0x2] sm:$0x1]
    %v1076 = vld [vmem:[%s2 + $0x3] sm:$0x1]
    %vm1077 = vcmask 523264
    %v1078 = vsel %vm1077, %v1057, 0.0
    %v1079 = vsel %vm1077, %v1062, 0.0
    %v1080 = vadd.f32 %v1078, %v1079
    %v1081 = vsel %vm1077, %v1067, 0.0
    %v1082 = vadd.f32 %v1080, %v1081
    %v1083 = vsel %vm1077, %v1072, 0.0
    %v1084 = vadd.f32 %v1082, %v1083
    %v1085 = vrot.slane %v1084, 4
    %v1086 = vadd.f32 %v1084, %v1085
    %v1087 = vrot.slane %v1086, 2
    %v1088 = vadd.f32 %v1086, %v1087
    %v1089 = vrot.slane %v1088, 1
    %v1090 = vadd.f32 %v1088, %v1089
    %v1091 = vrcp.pop 32.0
    %v1092 = vmul.f32 %v1090, %v1091
    %v1093 = vsub.f32 %v1057, %v1092
    %v1094 = vsub.f32 %v1062, %v1092
    %v1095 = vsub.f32 %v1067, %v1092
    %v1096 = vsub.f32 %v1072, %v1092
    %v1097 = vmul.f32 %v1093, %v1093
    %v1098 = vmul.f32 %v1094, %v1094
    %v1099 = vmul.f32 %v1095, %v1095
    %v1100 = vmul.f32 %v1096, %v1096
    %v1101 = vsel %vm1077, %v1097, 0.0
    %v1102 = vsel %vm1077, %v1098, 0.0
    %v1103 = vadd.f32 %v1101, %v1102
    %v1104 = vsel %vm1077, %v1099, 0.0
    %v1105 = vadd.f32 %v1103, %v1104
    %v1106 = vsel %vm1077, %v1100, 0.0
    %v1107 = vadd.f32 %v1105, %v1106
    %v1108 = vrot.slane %v1107, 4
    %v1109 = vadd.f32 %v1107, %v1108
    %v1110 = vrot.slane %v1109, 2
    %v1111 = vadd.f32 %v1109, %v1110
    %v1112 = vrot.slane %v1111, 1
    %v1113 = vadd.f32 %v1111, %v1112
    %v1114 = vmul.f32 %v1113, %v1091
    %v1115 = vadd.f32 %v1114, 1e-05
    %v1116 = vrsqrt.pop %v1115
    %v1117 = vmul.f32 %v1093, %v1116
    %v1118 = vmul.f32 %v1094, %v1116
    %v1119 = vmul.f32 %v1095, %v1116
    %v1120 = vmul.f32 %v1096, %v1116
    %v1121 = vlaneseq
    %v1122 = vshrl.u32 %v1121, 7
    %v1123 = vsub.s32 0, %v1122
    %v1124 = vrot.slane %v1075, %v1123
    %v1125 = vmul.f32 %v1117, %v1124
    %v1126 = vmul.f32 %v1118, %v1124
    %v1127 = vmul.f32 %v1119, %v1124
    %v1128 = vmul.f32 %v1120, %v1124
    %v1129 = vlaneseq
    %v1130 = vshrl.u32 %v1129, 7
    %v1131 = vsub.s32 0, %v1130
    %v1132 = vrot.slane %v1076, %v1131
    %v1133 = vadd.f32 %v1125, %v1132
    %v1134 = vadd.f32 %v1126, %v1132
    %v1135 = vadd.f32 %v1127, %v1132
    %v1136 = vadd.f32 %v1128, %v1132
    %v1137 = vmax.f32 %v1133, 0.0
    %v1138 = vmax.f32 %v1134, 0.0
    %v1139 = vmax.f32 %v1135, 0.0
    %v1140 = vmax.f32 %v1136, 0.0
    %vm1141 = vcmask 521216
    %1142 = vst.msk [vmem:[#allocation4] sm:$0x3f] %vm1141, 0.0
    %1143 = vst.msk [vmem:[#allocation4 + $0x8] sm:$0x3f] %vm1141, 0.0
    %1144 = vst.msk [vmem:[#allocation4 + $0x10] sm:$0x3f] %vm1141, 0.0
    %1145 = vst.msk [vmem:[#allocation4 + $0x18] sm:$0x3f] %vm1141, 0.0
    %1146 = vst.msk [vmem:[#allocation4 + $0x20] sm:$0x3f] %vm1141, 0.0
    %1147 = vst.msk [vmem:[#allocation4 + $0x28] sm:$0x3f] %vm1141, 0.0
    %1148 = vst.msk [vmem:[#allocation5] sm:$0x3f] %vm1141, 0.0
    %1149 = vst.msk [vmem:[#allocation5 + $0x8] sm:$0x3f] %vm1141, 0.0
    %1150 = vst.msk [vmem:[#allocation5 + $0x10] sm:$0x3f] %vm1141, 0.0
    %1151 = vst.msk [vmem:[#allocation5 + $0x18] sm:$0x3f] %vm1141, 0.0
    %v1156 = vcombine.high %v1137, %v1137
    %v1157 = vcombine.high %v1138, %v1138
    %v1158 = vcombine.high %v1139, %v1139
    %v1159 = vcombine.high %v1140, %v1140
    %vm1164 = vcmask 519168
    %1165 = vst.msk [vmem:[#allocation5 + $0x1] sm:$0xf] %vm1164, %v1137
    %1166 = vst.msk [vmem:[#allocation5 + $0x9] sm:$0xf] %vm1164, %v1138
    %1167 = vst.msk [vmem:[#allocation5 + $0x11] sm:$0xf] %vm1164, %v1139
    %1168 = vst.msk [vmem:[#allocation5 + $0x19] sm:$0xf] %vm1164, %v1140
    %s1169 = scalar_lea.vmem [#allocation4], 8
    %1170 = vst.msk [vmem:[%s1169 + $0x1] sm:$0xf] %vm1164, %v1156
    %1171 = vst.msk [vmem:[%s1169 + $0x9] sm:$0xf] %vm1164, %v1157
    %1172 = vst.msk [vmem:[%s1169 + $0x19] sm:$0xf] %vm1164, %v1158
    %1173 = vst.msk [vmem:[%s1169 + $0x21] sm:$0xf] %vm1164, %v1159
    %v1174 = vld [vmem:[#allocation4] ss:$2 sm:$0x3]
    %s1175 = scalar_lea.vmem [#allocation4], 8
    %v1176 = vld [vmem:[%s1175] ss:$2 sm:$0x3]
    %s1177 = scalar_lea.vmem [#allocation4], 24
    %v1178 = vld [vmem:[%s1177] ss:$2 sm:$0x3]
    %s1179 = scalar_lea.vmem [#allocation4], 32
    %v1180 = vld [vmem:[%s1179] ss:$2 sm:$0x3]
    %v1185 = vcombine.low %v1174, %v1176
    %v1186 = vcombine.low %v1178, %v1180
    %v1188 = vunpack.c.l.s4 1983009808
    %v1189 = vunpack.c.0.s8 %v1188
    %v1190 = vlaneseq
    %v1191 = vshrl.u32 %v1190, 7
    %v1192 = vsub.s32 %v1189, %v1191
    %v1193 = vrot.slane %v1185, %v1192
    %v1195 = vunpack.c.l.s4 1983009808
    %v1196 = vunpack.c.0.s8 %v1195
    %v1197 = vlaneseq
    %v1198 = vshrl.u32 %v1197, 7
    %v1199 = vsub.s32 %v1196, %v1198
    %v1200 = vrot.slane %v1186, %v1199
    %v1201 = vcombine.low %v1193, %v1200
    %1203 = vst.msk [vmem:[#allocation6] sm:$0xff] %vm1077, %v1201
    %s1204 = scalar_lea.vmem [#allocation4], 1
    %v1205 = vld [vmem:[%s1204] ss:$2 sm:$0x3]
    %s1206 = scalar_lea.vmem [#allocation4], 9
    %v1207 = vld [vmem:[%s1206] ss:$2 sm:$0x3]
    %s1208 = scalar_lea.vmem [#allocation4], 25
    %v1209 = vld [vmem:[%s1208] ss:$2 sm:$0x3]
    %s1210 = scalar_lea.vmem [#allocation4], 33
    %v1211 = vld [vmem:[%s1210] ss:$2 sm:$0x3]
    %v1216 = vcombine.low %v1205, %v1207
    %v1217 = vcombine.low %v1209, %v1211
    %v1219 = vunpack.c.l.s4 1983009808
    %v1220 = vunpack.c.0.s8 %v1219
    %v1221 = vlaneseq
    %v1222 = vshrl.u32 %v1221, 7
    %v1223 = vsub.s32 %v1220, %v1222
    %v1224 = vrot.slane %v1216, %v1223
    %v1226 = vunpack.c.l.s4 1983009808
    %v1227 = vunpack.c.0.s8 %v1226
    %v1228 = vlaneseq
    %v1229 = vshrl.u32 %v1228, 7
    %v1230 = vsub.s32 %v1227, %v1229
    %v1231 = vrot.slane %v1217, %v1230
    %v1232 = vcombine.low %v1224, %v1231
    %1233 = vrot.lane.b32.xlu0 %v1232, 64
    %v1234 = vpop.permute.xlu0 %1233
    %vm1236 = vcmask 1048064
    %1237 = vst.msk [vmem:[#allocation6] sm:$0xff] %vm1236, %v1234
    %s1238 = scalar_lea.vmem [#allocation4], 2
    %v1239 = vld [vmem:[%s1238] ss:$2 sm:$0x3]
    %s1240 = scalar_lea.vmem [#allocation4], 10
    %v1241 = vld [vmem:[%s1240] ss:$2 sm:$0x3]
    %s1242 = scalar_lea.vmem [#allocation4], 26
    %v1243 = vld [vmem:[%s1242] ss:$2 sm:$0x3]
    %s1244 = scalar_lea.vmem [#allocation4], 34
    %v1245 = vld [vmem:[%s1244] ss:$2 sm:$0x3]
    %v1250 = vcombine.low %v1239, %v1241
    %v1251 = vcombine.low %v1243, %v1245
    %v1253 = vunpack.c.l.s4 1983009808
    %v1254 = vunpack.c.0.s8 %v1253
    %v1255 = vlaneseq
    %v1256 = vshrl.u32 %v1255, 7
    %v1257 = vsub.s32 %v1254, %v1256
    %v1258 = vrot.slane %v1250, %v1257
    %v1260 = vunpack.c.l.s4 1983009808
    %v1261 = vunpack.c.0.s8 %v1260
    %v1262 = vlaneseq
    %v1263 = vshrl.u32 %v1262, 7
    %v1264 = vsub.s32 %v1261, %v1263
    %v1265 = vrot.slane %v1251, %v1264
    %v1266 = vcombine.low %v1258, %v1265
    %1268 = vst.msk [vmem:[#allocation6 + $0x8] sm:$0xff] %vm1077, %v1266
    %v1269 = vld [vmem:[#allocation5] ss:$2 sm:$0x3]
    %s1270 = scalar_lea.vmem [#allocation5], 8
    %v1271 = vld [vmem:[%s1270] ss:$2 sm:$0x3]
    %s1272 = scalar_lea.vmem [#allocation5], 16
    %v1273 = vld [vmem:[%s1272] ss:$2 sm:$0x3]
    %s1274 = scalar_lea.vmem [#allocation5], 24
    %v1275 = vld [vmem:[%s1274] ss:$2 sm:$0x3]
    %v1280 = vcombine.low %v1269, %v1271
    %v1281 = vcombine.low %v1273, %v1275
    %v1283 = vunpack.c.l.s4 1983009808
    %v1284 = vunpack.c.0.s8 %v1283
    %v1285 = vlaneseq
    %v1286 = vshrl.u32 %v1285, 7
    %v1287 = vsub.s32 %v1284, %v1286
    %v1288 = vrot.slane %v1280, %v1287
    %v1290 = vunpack.c.l.s4 1983009808
    %v1291 = vunpack.c.0.s8 %v1290
    %v1292 = vlaneseq
    %v1293 = vshrl.u32 %v1292, 7
    %v1294 = vsub.s32 %v1291, %v1293
    %v1295 = vrot.slane %v1281, %v1294
    %v1296 = vcombine.low %v1288, %v1295
    %1297 = vrot.lane.b32.xlu0 %v1296, 64
    %v1298 = vpop.permute.xlu0 %1297
    %1300 = vst.msk [vmem:[#allocation6 + $0x8] sm:$0xff] %vm1236, %v1298
    %s1301 = scalar_lea.vmem [#allocation5], 1
    %v1302 = vld [vmem:[%s1301] ss:$2 sm:$0x3]
    %s1303 = scalar_lea.vmem [#allocation5], 9
    %v1304 = vld [vmem:[%s1303] ss:$2 sm:$0x3]
    %s1305 = scalar_lea.vmem [#allocation5], 17
    %v1306 = vld [vmem:[%s1305] ss:$2 sm:$0x3]
    %s1307 = scalar_lea.vmem [#allocation5], 25
    %v1308 = vld [vmem:[%s1307] ss:$2 sm:$0x3]
    %v1313 = vcombine.low %v1302, %v1304
    %v1314 = vcombine.low %v1306, %v1308
    %v1316 = vunpack.c.l.s4 1983009808
    %v1317 = vunpack.c.0.s8 %v1316
    %v1318 = vlaneseq
    %v1319 = vshrl.u32 %v1318, 7
    %v1320 = vsub.s32 %v1317, %v1319
    %v1321 = vrot.slane %v1313, %v1320
    %v1323 = vunpack.c.l.s4 1983009808
    %v1324 = vunpack.c.0.s8 %v1323
    %v1325 = vlaneseq
    %v1326 = vshrl.u32 %v1325, 7
    %v1327 = vsub.s32 %v1324, %v1326
    %v1328 = vrot.slane %v1314, %v1327
    %v1329 = vcombine.low %v1321, %v1328
    %1331 = vst.msk [vmem:[#allocation6 + $0x10] sm:$0xff] %vm1077, %v1329
    %s1332 = scalar_lea.vmem [#allocation5], 2
    %v1333 = vld [vmem:[%s1332] ss:$2 sm:$0x3]
    %s1334 = scalar_lea.vmem [#allocation5], 10
    %v1335 = vld [vmem:[%s1334] ss:$2 sm:$0x3]
    %s1336 = scalar_lea.vmem [#allocation5], 18
    %v1337 = vld [vmem:[%s1336] ss:$2 sm:$0x3]
    %s1338 = scalar_lea.vmem [#allocation5], 26
    %v1339 = vld [vmem:[%s1338] ss:$2 sm:$0x3]
    %v1344 = vcombine.low %v1333, %v1335
    %v1345 = vcombine.low %v1337, %v1339
    %v1347 = vunpack.c.l.s4 1983009808
    %v1348 = vunpack.c.0.s8 %v1347
    %v1349 = vlaneseq
    %v1350 = vshrl.u32 %v1349, 7
    %v1351 = vsub.s32 %v1348, %v1350
    %v1352 = vrot.slane %v1344, %v1351
    %v1354 = vunpack.c.l.s4 1983009808
    %v1355 = vunpack.c.0.s8 %v1354
    %v1356 = vlaneseq
    %v1357 = vshrl.u32 %v1356, 7
    %v1358 = vsub.s32 %v1355, %v1357
    %v1359 = vrot.slane %v1345, %v1358
    %v1360 = vcombine.low %v1352, %v1359
    %1361 = vrot.lane.b32.xlu0 %v1360, 64
    %v1362 = vpop.permute.xlu0 %1361
    %1364 = vst.msk [vmem:[#allocation6 + $0x10] sm:$0xff] %vm1236, %v1362
    %v1365 = vld [vmem:[%s1169] ss:$2 sm:$0x3]
    %s1366 = scalar_lea.vmem %s1169, 8 [#allocation4]
    %v1367 = vld [vmem:[%s1366] ss:$2 sm:$0x3]
    %s1368 = scalar_lea.vmem %s1169, 24 [#allocation4]
    %v1369 = vld [vmem:[%s1368] ss:$2 sm:$0x3]
    %s1370 = scalar_lea.vmem %s1169, 32 [#allocation4]
    %v1371 = vld [vmem:[%s1370] ss:$2 sm:$0x3]
    %v1376 = vcombine.low %v1365, %v1367
    %v1377 = vcombine.low %v1369, %v1371
    %v1379 = vunpack.c.l.s4 1983009808
    %v1380 = vunpack.c.0.s8 %v1379
    %v1381 = vlaneseq
    %v1382 = vshrl.u32 %v1381, 7
    %v1383 = vsub.s32 %v1380, %v1382
    %v1384 = vrot.slane %v1376, %v1383
    %v1386 = vunpack.c.l.s4 1983009808
    %v1387 = vunpack.c.0.s8 %v1386
    %v1388 = vlaneseq
    %v1389 = vshrl.u32 %v1388, 7
    %v1390 = vsub.s32 %v1387, %v1389
    %v1391 = vrot.slane %v1377, %v1390
    %v1392 = vcombine.low %v1384, %v1391
    %1394 = vst.msk [vmem:[#allocation6 + $0x18] sm:$0xff] %vm1077, %v1392
    %s1395 = scalar_lea.vmem %s1169, 1 [#allocation4]
    %v1396 = vld [vmem:[%s1395] ss:$2 sm:$0x3]
    %s1397 = scalar_lea.vmem %s1169, 9 [#allocation4]
    %v1398 = vld [vmem:[%s1397] ss:$2 sm:$0x3]
    %s1399 = scalar_lea.vmem %s1169, 25 [#allocation4]
    %v1400 = vld [vmem:[%s1399] ss:$2 sm:$0x3]
    %s1401 = scalar_lea.vmem %s1169, 33 [#allocation4]
    %v1402 = vld [vmem:[%s1401] ss:$2 sm:$0x3]
    %v1407 = vcombine.low %v1396, %v1398
    %v1408 = vcombine.low %v1400, %v1402
    %v1410 = vunpack.c.l.s4 1983009808
    %v1411 = vunpack.c.0.s8 %v1410
    %v1412 = vlaneseq
    %v1413 = vshrl.u32 %v1412, 7
    %v1414 = vsub.s32 %v1411, %v1413
    %v1415 = vrot.slane %v1407, %v1414
    %v1417 = vunpack.c.l.s4 1983009808
    %v1418 = vunpack.c.0.s8 %v1417
    %v1419 = vlaneseq
    %v1420 = vshrl.u32 %v1419, 7
    %v1421 = vsub.s32 %v1418, %v1420
    %v1422 = vrot.slane %v1408, %v1421
    %v1423 = vcombine.low %v1415, %v1422
    %1424 = vrot.lane.b32.xlu0 %v1423, 64
    %v1425 = vpop.permute.xlu0 %1424
    %1427 = vst.msk [vmem:[#allocation6 + $0x18] sm:$0xff] %vm1236, %v1425
    %s1428 = scalar_lea.vmem %s1169, 2 [#allocation4]
    %v1429 = vld [vmem:[%s1428] ss:$2 sm:$0x3]
    %s1430 = scalar_lea.vmem %s1169, 10 [#allocation4]
    %v1431 = vld [vmem:[%s1430] ss:$2 sm:$0x3]
    %s1432 = scalar_lea.vmem %s1169, 26 [#allocation4]
    %v1433 = vld [vmem:[%s1432] ss:$2 sm:$0x3]
    %s1434 = scalar_lea.vmem %s1169, 34 [#allocation4]
    %v1435 = vld [vmem:[%s1434] ss:$2 sm:$0x3]
    %v1440 = vcombine.low %v1429, %v1431
    %v1441 = vcombine.low %v1433, %v1435
    %v1443 = vunpack.c.l.s4 1983009808
    %v1444 = vunpack.c.0.s8 %v1443
    %v1445 = vlaneseq
    %v1446 = vshrl.u32 %v1445, 7
    %v1447 = vsub.s32 %v1444, %v1446
    %v1448 = vrot.slane %v1440, %v1447
    %v1450 = vunpack.c.l.s4 1983009808
    %v1451 = vunpack.c.0.s8 %v1450
    %v1452 = vlaneseq
    %v1453 = vshrl.u32 %v1452, 7
    %v1454 = vsub.s32 %v1451, %v1453
    %v1455 = vrot.slane %v1441, %v1454
    %v1456 = vcombine.low %v1448, %v1455
    %1458 = vst.msk [vmem:[#allocation6 + $0x20] sm:$0xff] %vm1077, %v1456
    %v1459 = vld [vmem:[#allocation6] sm:$0xff]
    %v1460 = vld [vmem:[#allocation6 + $0x8] sm:$0xff]
    %v1461 = vld [vmem:[#allocation6 + $0x10] sm:$0xff]
    %v1462 = vld [vmem:[#allocation6 + $0x18] sm:$0xff]
    %v1463 = vld [vmem:[#allocation6 + $0x20] sm:$0xff]
    %v1464 = vld [vmem:[%s1 + $0x140] sm:$0xff]
    %v1465 = vld [vmem:[%s1 + $0x148] sm:$0xff]
    %v1466 = vld [vmem:[%s1 + $0x150] sm:$0xff]
    %v1467 = vld [vmem:[%s1 + $0x158] sm:$0xff]
    %v1468 = vld [vmem:[%s1 + $0x160] sm:$0xff]
    %v1469 = vld [vmem:[%s1 + $0x168] sm:$0xff]
    %v1470 = vld [vmem:[%s1 + $0x170] sm:$0xff]
    %v1471 = vld [vmem:[%s1 + $0x178] sm:$0xff]
    %v1472 = vld [vmem:[%s1 + $0x180] sm:$0xff]
    %v1473 = vld [vmem:[%s1 + $0x188] sm:$0xff]
    %v1474 = vld [vmem:[%s1 + $0x190] sm:$0xff]
    %v1475 = vld [vmem:[%s1 + $0x198] sm:$0xff]
    %v1476 = vld [vmem:[%s1 + $0x1a0] sm:$0xff]
    %v1477 = vld [vmem:[%s1 + $0x1a8] sm:$0xff]
    %v1478 = vld [vmem:[%s1 + $0x1b0] sm:$0xff]
    %v1479 = vld [vmem:[%s1 + $0x1b8] sm:$0xff]
    %v1480 = vld [vmem:[%s1 + $0x1c0] sm:$0xff]
    %v1481 = vld [vmem:[%s1 + $0x1c8] sm:$0xff]
    %v1482 = vld [vmem:[%s1 + $0x1d0] sm:$0xff]
    %v1483 = vld [vmem:[%s1 + $0x1d8] sm:$0xff]
    %v1484 = vld [vmem:[%s1 + $0x1e0] sm:$0xff]
    %v1485 = vld [vmem:[%s1 + $0x1e8] sm:$0xff]
    %v1486 = vld [vmem:[%s1 + $0x1f0] sm:$0xff]
    %v1487 = vld [vmem:[%s1 + $0x1f8] sm:$0xff]
    %v1488 = vld [vmem:[%s1 + $0x200] sm:$0xff]
    %v1489 = vld [vmem:[%s1 + $0x208] sm:$0xff]
    %v1490 = vld [vmem:[%s1 + $0x210] sm:$0xff]
    %v1491 = vld [vmem:[%s1 + $0x218] sm:$0xff]
    %v1492 = vld [vmem:[%s1 + $0x220] sm:$0xff]
    %v1493 = vld [vmem:[%s1 + $0x228] sm:$0xff]
    %v1494 = vld [vmem:[%s1 + $0x230] sm:$0xff]
    %v1495 = vld [vmem:[%s1 + $0x238] sm:$0xff]
    %v1496 = vld [vmem:[%s1 + $0x240] sm:$0xff]
    %v1497 = vld [vmem:[%s1 + $0x248] sm:$0xff]
    %v1498 = vld [vmem:[%s1 + $0x250] sm:$0xff]
    %v1499 = vld [vmem:[%s1 + $0x258] sm:$0xff]
    %v1500 = vld [vmem:[%s1 + $0x260] sm:$0xff]
    %v1501 = vld [vmem:[%s1 + $0x268] sm:$0xff]
    %v1502 = vld [vmem:[%s1 + $0x270] sm:$0xff]
    %v1503 = vld [vmem:[%s1 + $0x278] sm:$0xff]
    %v1504 = vld [vmem:[%s1 + $0x280] sm:$0xff]
    %v1505 = vld [vmem:[%s1 + $0x288] sm:$0xff]
    %v1506 = vld [vmem:[%s1 + $0x290] sm:$0xff]
    %v1507 = vld [vmem:[%s1 + $0x298] sm:$0xff]
    %v1508 = vld [vmem:[%s1 + $0x2a0] sm:$0xff]
    %v1509 = vld [vmem:[%s1 + $0x2a8] sm:$0xff]
    %v1510 = vld [vmem:[%s1 + $0x2b0] sm:$0xff]
    %v1511 = vld [vmem:[%s1 + $0x2b8] sm:$0xff]
    %v1512 = vld [vmem:[%s1 + $0x2c0] sm:$0xff]
    %v1513 = vld [vmem:[%s1 + $0x2c8] sm:$0xff]
    %v1514 = vld [vmem:[%s1 + $0x2d0] sm:$0xff]
    %v1515 = vld [vmem:[%s1 + $0x2d8] sm:$0xff]
    %v1516 = vld [vmem:[%s1 + $0x2e0] sm:$0xff]
    %v1517 = vld [vmem:[%s1 + $0x2e8] sm:$0xff]
    %v1518 = vld [vmem:[%s1 + $0x2f0] sm:$0xff]
    %v1519 = vld [vmem:[%s1 + $0x2f8] sm:$0xff]
    %v1520 = vld [vmem:[%s1 + $0x300] sm:$0xff]
    %v1521 = vld [vmem:[%s1 + $0x308] sm:$0xff]
    %v1522 = vld [vmem:[%s1 + $0x310] sm:$0xff]
    %v1523 = vld [vmem:[%s1 + $0x318] sm:$0xff]
    %v1524 = vld [vmem:[%s1 + $0x320] sm:$0xff]
    %v1525 = vld [vmem:[%s1 + $0x328] sm:$0xff]
    %v1526 = vld [vmem:[%s1 + $0x330] sm:$0xff]
    %v1527 = vld [vmem:[%s1 + $0x338] sm:$0xff]
    %v1528 = vld [vmem:[%s1 + $0x340] sm:$0xff]
    %v1529 = vld [vmem:[%s1 + $0x348] sm:$0xff]
    %v1530 = vld [vmem:[%s1 + $0x350] sm:$0xff]
    %v1531 = vld [vmem:[%s1 + $0x358] sm:$0xff]
    %v1532 = vld [vmem:[%s1 + $0x360] sm:$0xff]
    %v1533 = vld [vmem:[%s1 + $0x368] sm:$0xff]
    %v1534 = vld [vmem:[%s1 + $0x370] sm:$0xff]
    %v1535 = vld [vmem:[%s1 + $0x378] sm:$0xff]
    %v1537 = vsel %vm1077, %v1463, 0
    %1539 = vmatprep.subr.mxu0 0.0
    %1540 = vmatpush1.msra.mxu0 %v1464
    %1541 = vmatprep.subr.mxu0 0.0
    %1542 = vmatpush1.msra.mxu0 %v1465
    %1543 = vmatprep.subr.mxu0 0.0
    %1544 = vmatpush1.msra.mxu0 %v1466
    %1545 = vmatprep.subr.mxu0 0.0
    %1546 = vmatpush1.msra.mxu0 %v1467
    %1547 = vmatprep.subr.mxu0 0.0
    %1548 = vmatpush1.msra.mxu0 %v1468
    %1549 = vmatprep.subr.mxu0 0.0
    %1550 = vmatpush1.msra.mxu0 %v1469
    %1551 = vmatprep.subr.mxu0 0.0
    %1552 = vmatpush1.msra.mxu0 %v1470
    %1553 = vmatprep.subr.mxu0 0.0
    %1554 = vmatpush1.msra.mxu0 %v1471
    %1555 = vmatprep.subr.mxu0 0.0
    %1556 = vmatpush1.msra.mxu0 %v1472
    %1557 = vmatprep.subr.mxu0 0.0
    %1558 = vmatpush1.msra.mxu0 %v1473
    %1559 = vmatprep.subr.mxu0 0.0
    %1560 = vmatpush1.msra.mxu0 %v1474
    %1561 = vmatprep.subr.mxu0 0.0
    %1562 = vmatpush1.msra.mxu0 %v1475
    %1563 = vmatprep.subr.mxu0 0.0
    %1564 = vmatpush1.msra.mxu0 %v1476
    %1565 = vmatprep.subr.mxu0 0.0
    %1566 = vmatpush1.msra.mxu0 %v1477
    %1567 = vmatprep.subr.mxu0 0.0
    %1568 = vmatpush1.msra.mxu0 %v1478
    %1569 = vmatprep.subr.mxu0 0.0
    %1570 = vmatpush1.msra.mxu0 %v1479
    %1571 = vmatprep.subr.mxu0 0.0
    %1572 = vmatpush1.msra.mxu0 %v1480
    %1573 = vmatprep.subr.mxu0 0.0
    %1574 = vmatpush1.msra.mxu0 %v1481
    %1575 = vmatprep.subr.mxu0 0.0
    %1576 = vmatpush1.msra.mxu0 %v1482
    %1577 = vmatprep.subr.mxu0 0.0
    %1578 = vmatpush1.msra.mxu0 %v1483
    %1579 = vmatprep.subr.mxu0 0.0
    %1580 = vmatpush1.msra.mxu0 %v1484
    %1581 = vmatprep.subr.mxu0 0.0
    %1582 = vmatpush1.msra.mxu0 %v1485
    %1583 = vmatprep.subr.mxu0 0.0
    %1584 = vmatpush1.msra.mxu0 %v1486
    %1585 = vmatprep.subr.mxu0 0.0
    %1586 = vmatpush1.msra.mxu0 %v1487
    %1587 = vmatprep.subr.mxu0 0.0
    %1588 = vmatpush1.msra.mxu0 %v1488
    %1589 = vmatprep.subr.mxu0 0.0
    %1590 = vmatpush1.msra.mxu0 %v1489
    %1591 = vmatprep.subr.mxu0 0.0
    %1592 = vmatpush1.msra.mxu0 %v1490
    %1593 = vmatprep.subr.mxu0 0.0
    %1594 = vmatpush1.msra.mxu0 %v1491
    %1595 = vmatprep.subr.mxu0 0.0
    %1596 = vmatpush1.msra.mxu0 %v1492
    %1597 = vmatprep.subr.mxu0 0.0
    %1598 = vmatpush1.msra.mxu0 %v1493
    %1599 = vmatprep.subr.mxu0 0.0
    %1600 = vmatpush1.msra.mxu0 %v1494
    %1601 = vmatprep.subr.mxu0 0.0
    %1602 = vmatpush1.msra.mxu0 %v1495
    %1603 = vmatprep.mubr.f32.mxu0 %v1460
    %1604 = vmatmul.mubr.f32.gmra.mrb[0].mxu0 %v1459
    %v1605 = vpop.f32.mrb[0].mxu0
    %v1606 = vadd.f32 0.0, %v1605
    %v1607 = vpop.f32.mrb[0].mxu0
    %1608 = vdwg.mxu0
    %1609 = vmatprep.subr.mxu0 0.0
    %1610 = vmatpush1.msra.mxu0 %v1496
    %1611 = vmatprep.subr.mxu0 0.0
    %1612 = vmatpush1.msra.mxu0 %v1497
    %1613 = vmatprep.subr.mxu0 0.0
    %1614 = vmatpush1.msra.mxu0 %v1498
    %1615 = vmatprep.subr.mxu0 0.0
    %1616 = vmatpush1.msra.mxu0 %v1499
    %1617 = vmatprep.subr.mxu0 0.0
    %1618 = vmatpush1.msra.mxu0 %v1500
    %1619 = vmatprep.subr.mxu0 0.0
    %1620 = vmatpush1.msra.mxu0 %v1501
    %1621 = vmatprep.subr.mxu0 0.0
    %1622 = vmatpush1.msra.mxu0 %v1502
    %1623 = vmatprep.subr.mxu0 0.0
    %1624 = vmatpush1.msra.mxu0 %v1503
    %1625 = vmatprep.subr.mxu0 0.0
    %1626 = vmatpush1.msra.mxu0 %v1504
    %1627 = vmatprep.subr.mxu0 0.0
    %1628 = vmatpush1.msra.mxu0 %v1505
    %1629 = vmatprep.subr.mxu0 0.0
    %1630 = vmatpush1.msra.mxu0 %v1506
    %1631 = vmatprep.subr.mxu0 0.0
    %1632 = vmatpush1.msra.mxu0 %v1507
    %1633 = vmatprep.subr.mxu0 0.0
    %1634 = vmatpush1.msra.mxu0 %v1508
    %1635 = vmatprep.subr.mxu0 0.0
    %1636 = vmatpush1.msra.mxu0 %v1509
    %1637 = vmatprep.subr.mxu0 0.0
    %1638 = vmatpush1.msra.mxu0 %v1510
    %1639 = vmatprep.subr.mxu0 0.0
    %1640 = vmatpush1.msra.mxu0 %v1511
    %1641 = vmatprep.subr.mxu0 0.0
    %1642 = vmatpush1.msra.mxu0 %v1512
    %1643 = vmatprep.subr.mxu0 0.0
    %1644 = vmatpush1.msra.mxu0 %v1513
    %1645 = vmatprep.subr.mxu0 0.0
    %1646 = vmatpush1.msra.mxu0 %v1514
    %1647 = vmatprep.subr.mxu0 0.0
    %1648 = vmatpush1.msra.mxu0 %v1515
    %1649 = vmatprep.subr.mxu0 0.0
    %1650 = vmatpush1.msra.mxu0 %v1516
    %1651 = vmatprep.subr.mxu0 0.0
    %1652 = vmatpush1.msra.mxu0 %v1517
    %1653 = vmatprep.subr.mxu0 0.0
    %1654 = vmatpush1.msra.mxu0 %v1518
    %1655 = vmatprep.subr.mxu0 0.0
    %1656 = vmatpush1.msra.mxu0 %v1519
    %1657 = vmatprep.subr.mxu0 0.0
    %1658 = vmatpush1.msra.mxu0 %v1520
    %1659 = vmatprep.subr.mxu0 0.0
    %1660 = vmatpush1.msra.mxu0 %v1521
    %1661 = vmatprep.subr.mxu0 0.0
    %1662 = vmatpush1.msra.mxu0 %v1522
    %1663 = vmatprep.subr.mxu0 0.0
    %1664 = vmatpush1.msra.mxu0 %v1523
    %1665 = vmatprep.subr.mxu0 0.0
    %1666 = vmatpush1.msra.mxu0 %v1524
    %1667 = vmatprep.subr.mxu0 0.0
    %1668 = vmatpush1.msra.mxu0 %v1525
    %1669 = vmatprep.subr.mxu0 0.0
    %1670 = vmatpush1.msra.mxu0 %v1526
    %1671 = vmatprep.subr.mxu0 0.0
    %1672 = vmatpush1.msra.mxu0 %v1527
    %1673 = vmatprep.mubr.f32.mxu0 %v1462
    %1674 = vmatmul.mubr.f32.gmra.mrb[0].mxu0 %v1461
    %v1675 = vpop.f32.mrb[0].mxu0
    %v1676 = vadd.f32 %v1606, %v1675
    %v1677 = vpop.f32.mrb[0].mxu0
    %1678 = vdwg.mxu0
    %1679 = vmatprep.subr.mxu0 0.0
    %1680 = vmatpush1.msra.mxu0 %v1528
    %1681 = vmatprep.subr.mxu0 0.0
    %1682 = vmatpush1.msra.mxu0 %v1529
    %1683 = vmatprep.subr.mxu0 0.0
    %1684 = vmatpush1.msra.mxu0 %v1530
    %1685 = vmatprep.subr.mxu0 0.0
    %1686 = vmatpush1.msra.mxu0 %v1531
    %1687 = vmatprep.subr.mxu0 0.0
    %1688 = vmatpush1.msra.mxu0 %v1532
    %1689 = vmatprep.subr.mxu0 0.0
    %1690 = vmatpush1.msra.mxu0 %v1533
    %1691 = vmatprep.subr.mxu0 0.0
    %1692 = vmatpush1.msra.mxu0 %v1534
    %1693 = vmatprep.subr.mxu0 0.0
    %1694 = vmatpush1.msra.mxu0 %v1535
    %1695 = vmatprep.subr.mxu0 0.0
    %1696 = vmatpush1.msra.mxu0 0.0
    %1697 = vmatprep.subr.mxu0 0.0
    %1698 = vmatpush1.msra.mxu0 0.0
    %1699 = vmatprep.subr.mxu0 0.0
    %1700 = vmatpush1.msra.mxu0 0.0
    %1701 = vmatprep.subr.mxu0 0.0
    %1702 = vmatpush1.msra.mxu0 0.0
    %1703 = vmatprep.subr.mxu0 0.0
    %1704 = vmatpush1.msra.mxu0 0.0
    %1705 = vmatprep.subr.mxu0 0.0
    %1706 = vmatpush1.msra.mxu0 0.0
    %1707 = vmatprep.subr.mxu0 0.0
    %1708 = vmatpush1.msra.mxu0 0.0
    %1709 = vmatprep.subr.mxu0 0.0
    %1710 = vmatpush1.msra.mxu0 0.0
    %1711 = vmatprep.subr.mxu0 0.0
    %1712 = vmatpush1.msra.mxu0 0.0
    %1713 = vmatprep.subr.mxu0 0.0
    %1714 = vmatpush1.msra.mxu0 0.0
    %1715 = vmatprep.subr.mxu0 0.0
    %1716 = vmatpush1.msra.mxu0 0.0
    %1717 = vmatprep.subr.mxu0 0.0
    %1718 = vmatpush1.msra.mxu0 0.0
    %1719 = vmatprep.subr.mxu0 0.0
    %1720 = vmatpush1.msra.mxu0 0.0
    %1721 = vmatprep.subr.mxu0 0.0
    %1722 = vmatpush1.msra.mxu0 0.0
    %1723 = vmatprep.subr.mxu0 0.0
    %1724 = vmatpush1.msra.mxu0 0.0
    %1725 = vmatprep.subr.mxu0 0.0
    %1726 = vmatpush1.msra.mxu0 0.0
    %1727 = vmatprep.subr.mxu0 0.0
    %1728 = vmatpush1.msra.mxu0 0.0
    %1729 = vmatprep.subr.mxu0 0.0
    %1730 = vmatpush1.msra.mxu0 0.0
    %1731 = vmatprep.subr.mxu0 0.0
    %1732 = vmatpush1.msra.mxu0 0.0
    %1733 = vmatprep.subr.mxu0 0.0
    %1734 = vmatpush1.msra.mxu0 0.0
    %1735 = vmatprep.subr.mxu0 0.0
    %1736 = vmatpush1.msra.mxu0 0.0
    %1737 = vmatprep.subr.mxu0 0.0
    %1738 = vmatpush1.msra.mxu0 0.0
    %1739 = vmatprep.subr.mxu0 0.0
    %1740 = vmatpush1.msra.mxu0 0.0
    %1741 = vmatprep.subr.mxu0 0.0
    %1742 = vmatpush1.msra.mxu0 0.0
    %1743 = vmatprep.mubr.f32.mxu0 0.0
    %1744 = vmatmul.mubr.f32.gmra.mrb[0].mxu0 %v1537
    %v1745 = vpop.f32.mrb[0].mxu0
    %v1746 = vadd.f32 %v1676, %v1745
    %v1747 = vpop.f32.mrb[0].mxu0
    %1748 = vdwg.mxu0
    %v1749 = vld [vmem:[%s2 + $0x4] sm:$0x1]
    %v1750 = vld [vmem:[%s2 + $0x5] sm:$0x1]
    %v1751 = vrot.slane %v1746, 4
    %v1752 = vadd.f32 %v1746, %v1751
    %v1753 = vrot.slane %v1752, 2
    %v1754 = vadd.f32 %v1752, %v1753
    %v1755 = vrot.slane %v1754, 1
    %v1756 = vadd.f32 %v1754, %v1755
    %v1757 = vrcp.pop 8.0
    %v1758 = vmul.f32 %v1756, %v1757
    %v1759 = vsub.f32 %v1746, %v1758
    %v1760 = vmul.f32 %v1759, %v1759
    %v1761 = vrot.slane %v1760, 4
    %v1762 = vadd.f32 %v1760, %v1761
    %v1763 = vrot.slane %v1762, 2
    %v1764 = vadd.f32 %v1762, %v1763
    %v1765 = vrot.slane %v1764, 1
    %v1766 = vadd.f32 %v1764, %v1765
    %v1767 = vmul.f32 %v1766, %v1757
    %v1768 = vadd.f32 %v1767, 1e-05
    %v1769 = vrsqrt.pop %v1768
    %v1770 = vmul.f32 %v1759, %v1769
    %v1771 = vlaneseq
    %v1772 = vshrl.u32 %v1771, 7
    %v1773 = vsub.s32 0, %v1772
    %v1774 = vrot.slane %v1749, %v1773
    %v1775 = vmul.f32 %v1770, %v1774
    %v1776 = vlaneseq
    %v1777 = vshrl.u32 %v1776, 7
    %v1778 = vsub.s32 0, %v1777
    %v1779 = vrot.slane %v1750, %v1778
    %v1780 = vadd.f32 %v1775, %v1779
    %v1781 = vmax.f32 %v1780, 0.0
    %v1783 = vcombine.high %v1781, %v1781
    %vm1785 = vcmask 1043456
    %v1786 = vsel %vm1785, %v1781, 0.0
    %v1787 = vrot.slane %v1786, 4
    %v1788 = vadd.f32 %v1786, %v1787
    %v1789 = vrot.slane %v1788, 2
    %v1790 = vadd.f32 %v1788, %v1789
    %v1791 = vrot.slane %v1790, 1
    %v1792 = vadd.f32 %v1790, %v1791
    %v1793 = vsel %vm1785, %v1783, 0.0
    %v1794 = vrot.slane %v1793, 4
    %v1795 = vadd.f32 %v1793, %v1794
    %v1796 = vrot.slane %v1795, 2
    %v1797 = vadd.f32 %v1795, %v1796
    %v1798 = vrot.slane %v1797, 1
    %v1799 = vadd.f32 %v1797, %v1798
    %v1800 = vrcp.pop 4.0
    %v1801 = vmul.f32 %v1792, %v1800
    %v1802 = vmul.f32 %v1799, %v1800
    %v1803 = vld [vmem:[%s1 + $0x380] sm:$0xff]
    %v1804 = vld [vmem:[%s1 + $0x388] sm:$0xff]
    %v1805 = vld [vmem:[%s1 + $0x390] sm:$0xff]
    %v1806 = vld [vmem:[%s1 + $0x398] sm:$0xff]
    %v1807 = vld [vmem:[%s1 + $0x3a0] sm:$0xff]
    %v1808 = vld [vmem:[%s1 + $0x3a8] sm:$0xff]
    %v1809 = vld [vmem:[%s1 + $0x3b0] sm:$0xff]
    %v1810 = vld [vmem:[%s1 + $0x3b8] sm:$0xff]
    %v1811 = vld [vmem:[%s1 + $0x3c0] sm:$0xff]
    %v1812 = vld [vmem:[%s1 + $0x3c8] sm:$0xff]
    %v1813 = vld [vmem:[%s1 + $0x3d0] sm:$0xff]
    %v1814 = vld [vmem:[%s1 + $0x3d8] sm:$0xff]
    %v1815 = vld [vmem:[%s1 + $0x3e0] sm:$0xff]
    %v1816 = vld [vmem:[%s1 + $0x3e8] sm:$0xff]
    %v1817 = vld [vmem:[%s1 + $0x3f0] sm:$0xff]
    %v1818 = vld [vmem:[%s1 + $0x3f8] sm:$0xff]
    %v1819 = vld [vmem:[%s2 + $0x6] sm:$0x1]
    %v1820 = vlaneseq
    %v1821 = vshrl.u32 %v1820, 7
    %v1822 = vsub.s32 0, %v1821
    %v1823 = vrot.slane %v1819, %v1822
    %vm1826 = vcmask 1041409
    %v1827 = vsel %vm1826, %v1802, %v1801
    %1829 = vmatprep.subr.mxu0 0.0
    %1830 = vmatpush1.msra.mxu0 %v1803
    %1831 = vmatprep.subr.mxu0 0.0
    %1832 = vmatpush1.msra.mxu0 %v1804
    %1833 = vmatprep.subr.mxu0 0.0
    %1834 = vmatpush1.msra.mxu0 %v1805
    %1835 = vmatprep.subr.mxu0 0.0
    %1836 = vmatpush1.msra.mxu0 %v1806
    %1837 = vmatprep.subr.mxu0 0.0
    %1838 = vmatpush1.msra.mxu0 %v1807
    %1839 = vmatprep.subr.mxu0 0.0
    %1840 = vmatpush1.msra.mxu0 %v1808
    %1841 = vmatprep.subr.mxu0 0.0
    %1842 = vmatpush1.msra.mxu0 %v1809
    %1843 = vmatprep.subr.mxu0 0.0
    %1844 = vmatpush1.msra.mxu0 %v1810
    %1845 = vmatprep.subr.mxu0 0.0
    %1846 = vmatpush1.msra.mxu0 %v1811
    %1847 = vmatprep.subr.mxu0 0.0
    %1848 = vmatpush1.msra.mxu0 %v1812
    %1849 = vmatprep.subr.mxu0 0.0
    %1850 = vmatpush1.msra.mxu0 %v1813
    %1851 = vmatprep.subr.mxu0 0.0
    %1852 = vmatpush1.msra.mxu0 %v1814
    %1853 = vmatprep.subr.mxu0 0.0
    %1854 = vmatpush1.msra.mxu0 %v1815
    %1855 = vmatprep.subr.mxu0 0.0
    %1856 = vmatpush1.msra.mxu0 %v1816
    %1857 = vmatprep.subr.mxu0 0.0
    %1858 = vmatpush1.msra.mxu0 %v1817
    %1859 = vmatprep.subr.mxu0 0.0
    %1860 = vmatpush1.msra.mxu0 %v1818
    %1861 = vmatprep.subr.mxu0 0.0
    %1862 = vmatpush1.msra.mxu0 0.0
    %1863 = vmatprep.subr.mxu0 0.0
    %1864 = vmatpush1.msra.mxu0 0.0
    %1865 = vmatprep.subr.mxu0 0.0
    %1866 = vmatpush1.msra.mxu0 0.0
    %1867 = vmatprep.subr.mxu0 0.0
    %1868 = vmatpush1.msra.mxu0 0.0
    %1869 = vmatprep.subr.mxu0 0.0
    %1870 = vmatpush1.msra.mxu0 0.0
    %1871 = vmatprep.subr.mxu0 0.0
    %1872 = vmatpush1.msra.mxu0 0.0
    %1873 = vmatprep.subr.mxu0 0.0
    %1874 = vmatpush1.msra.mxu0 0.0
    %1875 = vmatprep.subr.mxu0 0.0
    %1876 = vmatpush1.msra.mxu0 0.0
    %1877 = vmatprep.subr.mxu0 0.0
    %1878 = vmatpush1.msra.mxu0 0.0
    %1879 = vmatprep.subr.mxu0 0.0
    %1880 = vmatpush1.msra.mxu0 0.0
    %1881 = vmatprep.subr.mxu0 0.0
    %1882 = vmatpush1.msra.mxu0 0.0
    %1883 = vmatprep.subr.mxu0 0.0
    %1884 = vmatpush1.msra.mxu0 0.0
    %1885 = vmatprep.subr.mxu0 0.0
    %1886 = vmatpush1.msra.mxu0 0.0
    %1887 = vmatprep.subr.mxu0 0.0
    %1888 = vmatpush1.msra.mxu0 0.0
    %1889 = vmatprep.subr.mxu0 0.0
    %1890 = vmatpush1.msra.mxu0 0.0
    %1891 = vmatprep.subr.mxu0 0.0
    %1892 = vmatpush1.msra.mxu0 0.0
    %1893 = vmatprep.mubr.f32.mxu0 0.0
    %1894 = vmatmul.mubr.f32.gmra.mrb[0].mxu0 %v1827
    %v1895 = vpop.f32.mrb[0].mxu0
    %v1896 = vadd.f32 %v1823, %v1895
    %v1897 = vpop.f32.mrb[0].mxu0
    %1898 = vdwg.mxu0
    %1899 = vst.msk [vmem:[#allocation7] sm:$0x3] %vm420, %v1896
    // Predicated region
    $region14: #{image_encoder_forward.1} parent=1 // pred_check
      _
    $region15: #{image_encoder_forward.1} parent=1 // pred_check_branch
      %1901 = sbr.rel (0) target = $region17
    $region16: #{image_encoder_forward.1} parent=1 // pred_region
      %s1903 = ssub.s32 32, 32
      %1904 = vsyncadd [#allocation8], %s1903
      %s1906 = sshll.u32 [#allocation7], 4
      %s1907 = int_to_ptr.vmem [resolvable:$true] %s1906
      %1909 = dma.vmem_to_hbm [thread:$0]  %s1907, 32, %s3, [#allocation8]
    $region17: #{image_encoder_forward.1} parent=1 // pred_fallthru
      _
    // Predicated region
    $region18: #{image_encoder_forward.1} parent=1 // pred_check
      _
    $region19: #{image_encoder_forward.1} parent=1 // pred_check_branch
      %1911 = sbr.rel (0) target = $region21
    $region20: #{image_encoder_forward.1} parent=1 // pred_region
      %1912 = dma.done [#allocation8], 32
    $region21: #{image_encoder_forward.1} parent=1 // pred_fallthru
      _
    %1913 = vsyncpa [#allocation8], 1

</llo_original>
